<compile_context>
chip_gen: v7x
topology: tpu7x:2x2x1
jax: 0.10.0
libtpu: 0.0.40
codegen_flags: <defaults>
</compile_context>

<pallas_src>
import jax
import jax.numpy as jnp
from jax.experimental import pallas as pl
from jax.experimental.pallas import tpu as pltpu

_H = 12                      # hidden width
_LANES = 128

# offsets into the packed parameter vector (PyTorch (out, in) row-major order)
_W1_OFF = 0                  # (12, 2)  -> 24
_B1_OFF = _W1_OFF + _H * 2   # (12,)    -> 12
_W2_OFF = _B1_OFF + _H       # (12, 12) -> 144
_B2_OFF = _W2_OFF + _H * _H  # (12,)    -> 12
_W3_OFF = _B2_OFF + _H       # (1, 12)  -> 12
_B3_OFF = _W3_OFF + _H       # (1,)     -> 1
_N_PARAMS = _B3_OFF + 1      # 205 floats total (< 1 KiB, lives in SMEM)


def _mlp_kernel(p_ref, x_ref, o_ref):
    """p_ref: (205,) f32 in SMEM; x_ref: (2, R, 128) VMEM; o_ref: (R, 128) VMEM."""
    x0 = x_ref[0]                                   # (R, 128) feature 0, all f32
    x1 = x_ref[1]                                   # (R, 128) feature 1

    # Layer 1: 2 -> 12, scalar-broadcast FMAs on the VPU, fully unrolled.
    h1 = []
    for j in range(_H):
        v = (x0 * p_ref[_W1_OFF + 2 * j]
             + x1 * p_ref[_W1_OFF + 2 * j + 1]
             + p_ref[_B1_OFF + j])
        h1.append(jnp.maximum(v, 0.0))              # ReLU

    # Layer 2: 12 -> 12.
    h2 = []
    for j in range(_H):
        acc = h1[0] * p_ref[_W2_OFF + _H * j]
        for k in range(1, _H):
            acc = acc + h1[k] * p_ref[_W2_OFF + _H * j + k]
        h2.append(jnp.maximum(acc + p_ref[_B2_OFF + j], 0.0))

    # Layer 3: 12 -> 1 (logits), written as a dense (R, 128) slab.
    out = h2[0] * p_ref[_W3_OFF]
    for k in range(1, _H):
        out = out + h2[k] * p_ref[_W3_OFF + k]
    o_ref[...] = (out + p_ref[_B3_OFF]).astype(o_ref.dtype)


def pack_params(params):
    """Concatenate PyTorch-layout (out, in) weights + biases into one f32 vector."""
    w1, b1, w2, b2, w3, b3 = params
    packed = jnp.concatenate([
        w1.reshape(-1), b1.reshape(-1),
        w2.reshape(-1), b2.reshape(-1),
        w3.reshape(-1), b3.reshape(-1),
    ]).astype(jnp.float32)
    assert packed.shape == (_N_PARAMS,)
    return packed


def moon_model_forward(x, params, *, rows_per_tile=64):
    """x: (N, 2) float32. Returns logits (N, 1) float32.

    rows_per_tile * 128 batch elements are processed per grid step
    (default 8192 rows/step). rows_per_tile must be a multiple of 8.
    """
    assert rows_per_tile % 8 == 0
    n = x.shape[0]

    # batch -> (rows, 128) tiling; pad rows up to a whole number of tiles.
    n_rows = -(-n // _LANES)
    r = n_rows if n_rows <= rows_per_tile else rows_per_tile
    n_rows_pad = -(-n_rows // r) * r
    n_pad = n_rows_pad * _LANES

    xt = jnp.transpose(x)                                   # (2, N), f32
    if n_pad != n:
        xt = jnp.pad(xt, ((0, 0), (0, n_pad - n)))
    xt = xt.reshape(2, n_rows_pad, _LANES)                  # (2, rows, 128)

    packed = pack_params(params)
    grid = (n_rows_pad // r,)                                # >=2 steps on large N
                                                             # (lets v7x use both TCs)

    out = pl.pallas_call(
        _mlp_kernel,
        out_shape=jax.ShapeDtypeStruct((n_rows_pad, _LANES), jnp.float32),
        grid_spec=pltpu.PrefetchScalarGridSpec(
            num_scalar_prefetch=0,
            grid=grid,
            in_specs=[
                # single packed parameter vector, resident in SMEM (scalar reads)
                pl.BlockSpec(memory_space=pltpu.MemorySpace.SMEM),
                # batch tile of the two input-feature planes
                pl.BlockSpec((2, r, _LANES), lambda i: (0, i, 0)),
            ],
            # lane-dense output slab (unmasked vst)
            out_specs=pl.BlockSpec((r, _LANES), lambda i: (i, 0)),
        ),
        compiler_params=pltpu.CompilerParams(
            dimension_semantics=("parallel",)),
    )(packed, xt)

    out = out.reshape(n_pad, 1)
    if n_pad != n:
        out = out[:n]
    return out


def init_params(key):
    """nn.Linear-style init: W (out, in), b (out,), U(-1/sqrt(fan_in), 1/sqrt(fan_in))."""
    def linear_init(k, fan_in, fan_out):
        kw, kb = jax.random.split(k)
        bound = 1.0 / float(fan_in) ** 0.5
        w = jax.random.uniform(kw, (fan_out, fan_in), jnp.float32, -bound, bound)
        b = jax.random.uniform(kb, (fan_out,), jnp.float32, -bound, bound)
        return w, b

    k1, k2, k3 = jax.random.split(key, 3)
    w1, b1 = linear_init(k1, 2, 12)
    w2, b2 = linear_init(k2, 12, 12)
    w3, b3 = linear_init(k3, 12, 1)
    return (w1, b1, w2, b2, w3, b3)


def reference_forward(x, params):
    """Pure-JAX reference matching PyTorch nn.Linear semantics (y = x @ W.T + b)."""
    w1, b1, w2, b2, w3, b3 = params
    h1 = jnp.maximum(x @ w1.T + b1, 0.0)
    h2 = jnp.maximum(h1 @ w2.T + b2, 0.0)
    return h2 @ w3.T + b3


if __name__ == "__main__":
    key = jax.random.PRNGKey(0)
    kx, kp = jax.random.split(key)
    params = init_params(kp)

    # Moon-dataset-style input: small batch of 2-D points.
    for batch in (16, 300):
        xb = jax.random.normal(jax.random.fold_in(kx, batch), (batch, 2), jnp.float32)
        out = moon_model_forward(xb, params)
        out = jax.block_until_ready(out)
        ref = reference_forward(xb, params)
        assert out.shape == (batch, 1)
        assert jnp.allclose(out, ref, atol=1e-5, rtol=1e-5)

    print("KERNEL_OK")
</pallas_src>

<mosaic_0001>
module attributes {stable_mosaic.version = 11 : i64} {
  func.func @_mlp_kernel(%arg0: i32, %arg1: memref<205xf32, #tpu.memory_space<smem>>, %arg2: memref<2x1x128xf32, #tpu.memory_space<vmem>>, %arg3: memref<1x128xf32, #tpu.memory_space<vmem>>) attributes {dimension_semantics = [#tpu.dimension_semantics<parallel>], iteration_bounds = array<i64: 1>, scalar_prefetch = 0 : i64, scratch_operands = 0 : i64, tpu.core_type = #tpu.core_type<tc>, window_params = [{transform_indices = @transform_0, window_bounds = array<i64: 205>}, {transform_indices = @transform_1, window_bounds = array<i64: 2, 1, 128>}, {transform_indices = @transform_2, window_bounds = array<i64: 1, 128>}]} {
    %c0 = arith.constant 0 : index
    %c0_0 = arith.constant 0 : index
    %c0_1 = arith.constant 0 : index
    %0 = vector.load %arg2[%c0, %c0_0, %c0_1] : memref<2x1x128xf32, #tpu.memory_space<vmem>>, vector<1x1x128xf32>
    %1 = vector.shape_cast %0 : vector<1x1x128xf32> to vector<1x128xf32>
    %c1 = arith.constant 1 : index
    %c0_2 = arith.constant 0 : index
    %c0_3 = arith.constant 0 : index
    %2 = vector.load %arg2[%c1, %c0_2, %c0_3] : memref<2x1x128xf32, #tpu.memory_space<vmem>>, vector<1x1x128xf32>
    %3 = vector.shape_cast %2 : vector<1x1x128xf32> to vector<1x128xf32>
    %c0_4 = arith.constant 0 : index
    %4 = memref.load %arg1[%c0_4] : memref<205xf32, #tpu.memory_space<smem>>
    %5 = vector.broadcast %4 : f32 to vector<1x128xf32>
    %6 = arith.mulf %1, %5 : vector<1x128xf32>
    %c1_5 = arith.constant 1 : index
    %7 = memref.load %arg1[%c1_5] : memref<205xf32, #tpu.memory_space<smem>>
    %8 = vector.broadcast %7 : f32 to vector<1x128xf32>
    %9 = arith.mulf %3, %8 : vector<1x128xf32>
    %10 = arith.addf %6, %9 : vector<1x128xf32>
    %c24 = arith.constant 24 : index
    %11 = memref.load %arg1[%c24] : memref<205xf32, #tpu.memory_space<smem>>
    %12 = vector.broadcast %11 : f32 to vector<1x128xf32>
    %13 = arith.addf %10, %12 : vector<1x128xf32>
    %cst = arith.constant 0.000000e+00 : f32
    %14 = vector.broadcast %cst : f32 to vector<1x128xf32>
    %15 = arith.maximumf %13, %14 : vector<1x128xf32>
    %c2 = arith.constant 2 : index
    %16 = memref.load %arg1[%c2] : memref<205xf32, #tpu.memory_space<smem>>
    %17 = vector.broadcast %16 : f32 to vector<1x128xf32>
    %18 = arith.mulf %1, %17 : vector<1x128xf32>
    %c3 = arith.constant 3 : index
    %19 = memref.load %arg1[%c3] : memref<205xf32, #tpu.memory_space<smem>>
    %20 = vector.broadcast %19 : f32 to vector<1x128xf32>
    %21 = arith.mulf %3, %20 : vector<1x128xf32>
    %22 = arith.addf %18, %21 : vector<1x128xf32>
    %c25 = arith.constant 25 : index
    %23 = memref.load %arg1[%c25] : memref<205xf32, #tpu.memory_space<smem>>
    %24 = vector.broadcast %23 : f32 to vector<1x128xf32>
    %25 = arith.addf %22, %24 : vector<1x128xf32>
    %cst_6 = arith.constant 0.000000e+00 : f32
    %26 = vector.broadcast %cst_6 : f32 to vector<1x128xf32>
    %27 = arith.maximumf %25, %26 : vector<1x128xf32>
    %c4 = arith.constant 4 : index
    %28 = memref.load %arg1[%c4] : memref<205xf32, #tpu.memory_space<smem>>
    %29 = vector.broadcast %28 : f32 to vector<1x128xf32>
    %30 = arith.mulf %1, %29 : vector<1x128xf32>
    %c5 = arith.constant 5 : index
    %31 = memref.load %arg1[%c5] : memref<205xf32, #tpu.memory_space<smem>>
    %32 = vector.broadcast %31 : f32 to vector<1x128xf32>
    %33 = arith.mulf %3, %32 : vector<1x128xf32>
    %34 = arith.addf %30, %33 : vector<1x128xf32>
    %c26 = arith.constant 26 : index
    %35 = memref.load %arg1[%c26] : memref<205xf32, #tpu.memory_space<smem>>
    %36 = vector.broadcast %35 : f32 to vector<1x128xf32>
    %37 = arith.addf %34, %36 : vector<1x128xf32>
    %cst_7 = arith.constant 0.000000e+00 : f32
    %38 = vector.broadcast %cst_7 : f32 to vector<1x128xf32>
    %39 = arith.maximumf %37, %38 : vector<1x128xf32>
    %c6 = arith.constant 6 : index
    %40 = memref.load %arg1[%c6] : memref<205xf32, #tpu.memory_space<smem>>
    %41 = vector.broadcast %40 : f32 to vector<1x128xf32>
    %42 = arith.mulf %1, %41 : vector<1x128xf32>
    %c7 = arith.constant 7 : index
    %43 = memref.load %arg1[%c7] : memref<205xf32, #tpu.memory_space<smem>>
    %44 = vector.broadcast %43 : f32 to vector<1x128xf32>
    %45 = arith.mulf %3, %44 : vector<1x128xf32>
    %46 = arith.addf %42, %45 : vector<1x128xf32>
    %c27 = arith.constant 27 : index
    %47 = memref.load %arg1[%c27] : memref<205xf32, #tpu.memory_space<smem>>
    %48 = vector.broadcast %47 : f32 to vector<1x128xf32>
    %49 = arith.addf %46, %48 : vector<1x128xf32>
    %cst_8 = arith.constant 0.000000e+00 : f32
    %50 = vector.broadcast %cst_8 : f32 to vector<1x128xf32>
    %51 = arith.maximumf %49, %50 : vector<1x128xf32>
    %c8 = arith.constant 8 : index
    %52 = memref.load %arg1[%c8] : memref<205xf32, #tpu.memory_space<smem>>
    %53 = vector.broadcast %52 : f32 to vector<1x128xf32>
    %54 = arith.mulf %1, %53 : vector<1x128xf32>
    %c9 = arith.constant 9 : index
    %55 = memref.load %arg1[%c9] : memref<205xf32, #tpu.memory_space<smem>>
    %56 = vector.broadcast %55 : f32 to vector<1x128xf32>
    %57 = arith.mulf %3, %56 : vector<1x128xf32>
    %58 = arith.addf %54, %57 : vector<1x128xf32>
    %c28 = arith.constant 28 : index
    %59 = memref.load %arg1[%c28] : memref<205xf32, #tpu.memory_space<smem>>
    %60 = vector.broadcast %59 : f32 to vector<1x128xf32>
    %61 = arith.addf %58, %60 : vector<1x128xf32>
    %cst_9 = arith.constant 0.000000e+00 : f32
    %62 = vector.broadcast %cst_9 : f32 to vector<1x128xf32>
    %63 = arith.maximumf %61, %62 : vector<1x128xf32>
    %c10 = arith.constant 10 : index
    %64 = memref.load %arg1[%c10] : memref<205xf32, #tpu.memory_space<smem>>
    %65 = vector.broadcast %64 : f32 to vector<1x128xf32>
    %66 = arith.mulf %1, %65 : vector<1x128xf32>
    %c11 = arith.constant 11 : index
    %67 = memref.load %arg1[%c11] : memref<205xf32, #tpu.memory_space<smem>>
    %68 = vector.broadcast %67 : f32 to vector<1x128xf32>
    %69 = arith.mulf %3, %68 : vector<1x128xf32>
    %70 = arith.addf %66, %69 : vector<1x128xf32>
    %c29 = arith.constant 29 : index
    %71 = memref.load %arg1[%c29] : memref<205xf32, #tpu.memory_space<smem>>
    %72 = vector.broadcast %71 : f32 to vector<1x128xf32>
    %73 = arith.addf %70, %72 : vector<1x128xf32>
    %cst_10 = arith.constant 0.000000e+00 : f32
    %74 = vector.broadcast %cst_10 : f32 to vector<1x128xf32>
    %75 = arith.maximumf %73, %74 : vector<1x128xf32>
    %c12 = arith.constant 12 : index
    %76 = memref.load %arg1[%c12] : memref<205xf32, #tpu.memory_space<smem>>
    %77 = vector.broadcast %76 : f32 to vector<1x128xf32>
    %78 = arith.mulf %1, %77 : vector<1x128xf32>
    %c13 = arith.constant 13 : index
    %79 = memref.load %arg1[%c13] : memref<205xf32, #tpu.memory_space<smem>>
    %80 = vector.broadcast %79 : f32 to vector<1x128xf32>
    %81 = arith.mulf %3, %80 : vector<1x128xf32>
    %82 = arith.addf %78, %81 : vector<1x128xf32>
    %c30 = arith.constant 30 : index
    %83 = memref.load %arg1[%c30] : memref<205xf32, #tpu.memory_space<smem>>
    %84 = vector.broadcast %83 : f32 to vector<1x128xf32>
    %85 = arith.addf %82, %84 : vector<1x128xf32>
    %cst_11 = arith.constant 0.000000e+00 : f32
    %86 = vector.broadcast %cst_11 : f32 to vector<1x128xf32>
    %87 = arith.maximumf %85, %86 : vector<1x128xf32>
    %c14 = arith.constant 14 : index
    %88 = memref.load %arg1[%c14] : memref<205xf32, #tpu.memory_space<smem>>
    %89 = vector.broadcast %88 : f32 to vector<1x128xf32>
    %90 = arith.mulf %1, %89 : vector<1x128xf32>
    %c15 = arith.constant 15 : index
    %91 = memref.load %arg1[%c15] : memref<205xf32, #tpu.memory_space<smem>>
    %92 = vector.broadcast %91 : f32 to vector<1x128xf32>
    %93 = arith.mulf %3, %92 : vector<1x128xf32>
    %94 = arith.addf %90, %93 : vector<1x128xf32>
    %c31 = arith.constant 31 : index
    %95 = memref.load %arg1[%c31] : memref<205xf32, #tpu.memory_space<smem>>
    %96 = vector.broadcast %95 : f32 to vector<1x128xf32>
    %97 = arith.addf %94, %96 : vector<1x128xf32>
    %cst_12 = arith.constant 0.000000e+00 : f32
    %98 = vector.broadcast %cst_12 : f32 to vector<1x128xf32>
    %99 = arith.maximumf %97, %98 : vector<1x128xf32>
    %c16 = arith.constant 16 : index
    %100 = memref.load %arg1[%c16] : memref<205xf32, #tpu.memory_space<smem>>
    %101 = vector.broadcast %100 : f32 to vector<1x128xf32>
    %102 = arith.mulf %1, %101 : vector<1x128xf32>
    %c17 = arith.constant 17 : index
    %103 = memref.load %arg1[%c17] : memref<205xf32, #tpu.memory_space<smem>>
    %104 = vector.broadcast %103 : f32 to vector<1x128xf32>
    %105 = arith.mulf %3, %104 : vector<1x128xf32>
    %106 = arith.addf %102, %105 : vector<1x128xf32>
    %c32 = arith.constant 32 : index
    %107 = memref.load %arg1[%c32] : memref<205xf32, #tpu.memory_space<smem>>
    %108 = vector.broadcast %107 : f32 to vector<1x128xf32>
    %109 = arith.addf %106, %108 : vector<1x128xf32>
    %cst_13 = arith.constant 0.000000e+00 : f32
    %110 = vector.broadcast %cst_13 : f32 to vector<1x128xf32>
    %111 = arith.maximumf %109, %110 : vector<1x128xf32>
    %c18 = arith.constant 18 : index
    %112 = memref.load %arg1[%c18] : memref<205xf32, #tpu.memory_space<smem>>
    %113 = vector.broadcast %112 : f32 to vector<1x128xf32>
    %114 = arith.mulf %1, %113 : vector<1x128xf32>
    %c19 = arith.constant 19 : index
    %115 = memref.load %arg1[%c19] : memref<205xf32, #tpu.memory_space<smem>>
    %116 = vector.broadcast %115 : f32 to vector<1x128xf32>
    %117 = arith.mulf %3, %116 : vector<1x128xf32>
    %118 = arith.addf %114, %117 : vector<1x128xf32>
    %c33 = arith.constant 33 : index
    %119 = memref.load %arg1[%c33] : memref<205xf32, #tpu.memory_space<smem>>
    %120 = vector.broadcast %119 : f32 to vector<1x128xf32>
    %121 = arith.addf %118, %120 : vector<1x128xf32>
    %cst_14 = arith.constant 0.000000e+00 : f32
    %122 = vector.broadcast %cst_14 : f32 to vector<1x128xf32>
    %123 = arith.maximumf %121, %122 : vector<1x128xf32>
    %c20 = arith.constant 20 : index
    %124 = memref.load %arg1[%c20] : memref<205xf32, #tpu.memory_space<smem>>
    %125 = vector.broadcast %124 : f32 to vector<1x128xf32>
    %126 = arith.mulf %1, %125 : vector<1x128xf32>
    %c21 = arith.constant 21 : index
    %127 = memref.load %arg1[%c21] : memref<205xf32, #tpu.memory_space<smem>>
    %128 = vector.broadcast %127 : f32 to vector<1x128xf32>
    %129 = arith.mulf %3, %128 : vector<1x128xf32>
    %130 = arith.addf %126, %129 : vector<1x128xf32>
    %c34 = arith.constant 34 : index
    %131 = memref.load %arg1[%c34] : memref<205xf32, #tpu.memory_space<smem>>
    %132 = vector.broadcast %131 : f32 to vector<1x128xf32>
    %133 = arith.addf %130, %132 : vector<1x128xf32>
    %cst_15 = arith.constant 0.000000e+00 : f32
    %134 = vector.broadcast %cst_15 : f32 to vector<1x128xf32>
    %135 = arith.maximumf %133, %134 : vector<1x128xf32>
    %c22 = arith.constant 22 : index
    %136 = memref.load %arg1[%c22] : memref<205xf32, #tpu.memory_space<smem>>
    %137 = vector.broadcast %136 : f32 to vector<1x128xf32>
    %138 = arith.mulf %1, %137 : vector<1x128xf32>
    %c23 = arith.constant 23 : index
    %139 = memref.load %arg1[%c23] : memref<205xf32, #tpu.memory_space<smem>>
    %140 = vector.broadcast %139 : f32 to vector<1x128xf32>
    %141 = arith.mulf %3, %140 : vector<1x128xf32>
    %142 = arith.addf %138, %141 : vector<1x128xf32>
    %c35 = arith.constant 35 : index
    %143 = memref.load %arg1[%c35] : memref<205xf32, #tpu.memory_space<smem>>
    %144 = vector.broadcast %143 : f32 to vector<1x128xf32>
    %145 = arith.addf %142, %144 : vector<1x128xf32>
    %cst_16 = arith.constant 0.000000e+00 : f32
    %146 = vector.broadcast %cst_16 : f32 to vector<1x128xf32>
    %147 = arith.maximumf %145, %146 : vector<1x128xf32>
    %c36 = arith.constant 36 : index
    %148 = memref.load %arg1[%c36] : memref<205xf32, #tpu.memory_space<smem>>
    %149 = vector.broadcast %148 : f32 to vector<1x128xf32>
    %150 = arith.mulf %15, %149 : vector<1x128xf32>
    %c37 = arith.constant 37 : index
    %151 = memref.load %arg1[%c37] : memref<205xf32, #tpu.memory_space<smem>>
    %152 = vector.broadcast %151 : f32 to vector<1x128xf32>
    %153 = arith.mulf %27, %152 : vector<1x128xf32>
    %154 = arith.addf %150, %153 : vector<1x128xf32>
    %c38 = arith.constant 38 : index
    %155 = memref.load %arg1[%c38] : memref<205xf32, #tpu.memory_space<smem>>
    %156 = vector.broadcast %155 : f32 to vector<1x128xf32>
    %157 = arith.mulf %39, %156 : vector<1x128xf32>
    %158 = arith.addf %154, %157 : vector<1x128xf32>
    %c39 = arith.constant 39 : index
    %159 = memref.load %arg1[%c39] : memref<205xf32, #tpu.memory_space<smem>>
    %160 = vector.broadcast %159 : f32 to vector<1x128xf32>
    %161 = arith.mulf %51, %160 : vector<1x128xf32>
    %162 = arith.addf %158, %161 : vector<1x128xf32>
    %c40 = arith.constant 40 : index
    %163 = memref.load %arg1[%c40] : memref<205xf32, #tpu.memory_space<smem>>
    %164 = vector.broadcast %163 : f32 to vector<1x128xf32>
    %165 = arith.mulf %63, %164 : vector<1x128xf32>
    %166 = arith.addf %162, %165 : vector<1x128xf32>
    %c41 = arith.constant 41 : index
    %167 = memref.load %arg1[%c41] : memref<205xf32, #tpu.memory_space<smem>>
    %168 = vector.broadcast %167 : f32 to vector<1x128xf32>
    %169 = arith.mulf %75, %168 : vector<1x128xf32>
    %170 = arith.addf %166, %169 : vector<1x128xf32>
    %c42 = arith.constant 42 : index
    %171 = memref.load %arg1[%c42] : memref<205xf32, #tpu.memory_space<smem>>
    %172 = vector.broadcast %171 : f32 to vector<1x128xf32>
    %173 = arith.mulf %87, %172 : vector<1x128xf32>
    %174 = arith.addf %170, %173 : vector<1x128xf32>
    %c43 = arith.constant 43 : index
    %175 = memref.load %arg1[%c43] : memref<205xf32, #tpu.memory_space<smem>>
    %176 = vector.broadcast %175 : f32 to vector<1x128xf32>
    %177 = arith.mulf %99, %176 : vector<1x128xf32>
    %178 = arith.addf %174, %177 : vector<1x128xf32>
    %c44 = arith.constant 44 : index
    %179 = memref.load %arg1[%c44] : memref<205xf32, #tpu.memory_space<smem>>
    %180 = vector.broadcast %179 : f32 to vector<1x128xf32>
    %181 = arith.mulf %111, %180 : vector<1x128xf32>
    %182 = arith.addf %178, %181 : vector<1x128xf32>
    %c45 = arith.constant 45 : index
    %183 = memref.load %arg1[%c45] : memref<205xf32, #tpu.memory_space<smem>>
    %184 = vector.broadcast %183 : f32 to vector<1x128xf32>
    %185 = arith.mulf %123, %184 : vector<1x128xf32>
    %186 = arith.addf %182, %185 : vector<1x128xf32>
    %c46 = arith.constant 46 : index
    %187 = memref.load %arg1[%c46] : memref<205xf32, #tpu.memory_space<smem>>
    %188 = vector.broadcast %187 : f32 to vector<1x128xf32>
    %189 = arith.mulf %135, %188 : vector<1x128xf32>
    %190 = arith.addf %186, %189 : vector<1x128xf32>
    %c47 = arith.constant 47 : index
    %191 = memref.load %arg1[%c47] : memref<205xf32, #tpu.memory_space<smem>>
    %192 = vector.broadcast %191 : f32 to vector<1x128xf32>
    %193 = arith.mulf %147, %192 : vector<1x128xf32>
    %194 = arith.addf %190, %193 : vector<1x128xf32>
    %c180 = arith.constant 180 : index
    %195 = memref.load %arg1[%c180] : memref<205xf32, #tpu.memory_space<smem>>
    %196 = vector.broadcast %195 : f32 to vector<1x128xf32>
    %197 = arith.addf %194, %196 : vector<1x128xf32>
    %cst_17 = arith.constant 0.000000e+00 : f32
    %198 = vector.broadcast %cst_17 : f32 to vector<1x128xf32>
    %199 = arith.maximumf %197, %198 : vector<1x128xf32>
    %c48 = arith.constant 48 : index
    %200 = memref.load %arg1[%c48] : memref<205xf32, #tpu.memory_space<smem>>
    %201 = vector.broadcast %200 : f32 to vector<1x128xf32>
    %202 = arith.mulf %15, %201 : vector<1x128xf32>
    %c49 = arith.constant 49 : index
    %203 = memref.load %arg1[%c49] : memref<205xf32, #tpu.memory_space<smem>>
    %204 = vector.broadcast %203 : f32 to vector<1x128xf32>
    %205 = arith.mulf %27, %204 : vector<1x128xf32>
    %206 = arith.addf %202, %205 : vector<1x128xf32>
    %c50 = arith.constant 50 : index
    %207 = memref.load %arg1[%c50] : memref<205xf32, #tpu.memory_space<smem>>
    %208 = vector.broadcast %207 : f32 to vector<1x128xf32>
    %209 = arith.mulf %39, %208 : vector<1x128xf32>
    %210 = arith.addf %206, %209 : vector<1x128xf32>
    %c51 = arith.constant 51 : index
    %211 = memref.load %arg1[%c51] : memref<205xf32, #tpu.memory_space<smem>>
    %212 = vector.broadcast %211 : f32 to vector<1x128xf32>
    %213 = arith.mulf %51, %212 : vector<1x128xf32>
    %214 = arith.addf %210, %213 : vector<1x128xf32>
    %c52 = arith.constant 52 : index
    %215 = memref.load %arg1[%c52] : memref<205xf32, #tpu.memory_space<smem>>
    %216 = vector.broadcast %215 : f32 to vector<1x128xf32>
    %217 = arith.mulf %63, %216 : vector<1x128xf32>
    %218 = arith.addf %214, %217 : vector<1x128xf32>
    %c53 = arith.constant 53 : index
    %219 = memref.load %arg1[%c53] : memref<205xf32, #tpu.memory_space<smem>>
    %220 = vector.broadcast %219 : f32 to vector<1x128xf32>
    %221 = arith.mulf %75, %220 : vector<1x128xf32>
    %222 = arith.addf %218, %221 : vector<1x128xf32>
    %c54 = arith.constant 54 : index
    %223 = memref.load %arg1[%c54] : memref<205xf32, #tpu.memory_space<smem>>
    %224 = vector.broadcast %223 : f32 to vector<1x128xf32>
    %225 = arith.mulf %87, %224 : vector<1x128xf32>
    %226 = arith.addf %222, %225 : vector<1x128xf32>
    %c55 = arith.constant 55 : index
    %227 = memref.load %arg1[%c55] : memref<205xf32, #tpu.memory_space<smem>>
    %228 = vector.broadcast %227 : f32 to vector<1x128xf32>
    %229 = arith.mulf %99, %228 : vector<1x128xf32>
    %230 = arith.addf %226, %229 : vector<1x128xf32>
    %c56 = arith.constant 56 : index
    %231 = memref.load %arg1[%c56] : memref<205xf32, #tpu.memory_space<smem>>
    %232 = vector.broadcast %231 : f32 to vector<1x128xf32>
    %233 = arith.mulf %111, %232 : vector<1x128xf32>
    %234 = arith.addf %230, %233 : vector<1x128xf32>
    %c57 = arith.constant 57 : index
    %235 = memref.load %arg1[%c57] : memref<205xf32, #tpu.memory_space<smem>>
    %236 = vector.broadcast %235 : f32 to vector<1x128xf32>
    %237 = arith.mulf %123, %236 : vector<1x128xf32>
    %238 = arith.addf %234, %237 : vector<1x128xf32>
    %c58 = arith.constant 58 : index
    %239 = memref.load %arg1[%c58] : memref<205xf32, #tpu.memory_space<smem>>
    %240 = vector.broadcast %239 : f32 to vector<1x128xf32>
    %241 = arith.mulf %135, %240 : vector<1x128xf32>
    %242 = arith.addf %238, %241 : vector<1x128xf32>
    %c59 = arith.constant 59 : index
    %243 = memref.load %arg1[%c59] : memref<205xf32, #tpu.memory_space<smem>>
    %244 = vector.broadcast %243 : f32 to vector<1x128xf32>
    %245 = arith.mulf %147, %244 : vector<1x128xf32>
    %246 = arith.addf %242, %245 : vector<1x128xf32>
    %c181 = arith.constant 181 : index
    %247 = memref.load %arg1[%c181] : memref<205xf32, #tpu.memory_space<smem>>
    %248 = vector.broadcast %247 : f32 to vector<1x128xf32>
    %249 = arith.addf %246, %248 : vector<1x128xf32>
    %cst_18 = arith.constant 0.000000e+00 : f32
    %250 = vector.broadcast %cst_18 : f32 to vector<1x128xf32>
    %251 = arith.maximumf %249, %250 : vector<1x128xf32>
    %c60 = arith.constant 60 : index
    %252 = memref.load %arg1[%c60] : memref<205xf32, #tpu.memory_space<smem>>
    %253 = vector.broadcast %252 : f32 to vector<1x128xf32>
    %254 = arith.mulf %15, %253 : vector<1x128xf32>
    %c61 = arith.constant 61 : index
    %255 = memref.load %arg1[%c61] : memref<205xf32, #tpu.memory_space<smem>>
    %256 = vector.broadcast %255 : f32 to vector<1x128xf32>
    %257 = arith.mulf %27, %256 : vector<1x128xf32>
    %258 = arith.addf %254, %257 : vector<1x128xf32>
    %c62 = arith.constant 62 : index
    %259 = memref.load %arg1[%c62] : memref<205xf32, #tpu.memory_space<smem>>
    %260 = vector.broadcast %259 : f32 to vector<1x128xf32>
    %261 = arith.mulf %39, %260 : vector<1x128xf32>
    %262 = arith.addf %258, %261 : vector<1x128xf32>
    %c63 = arith.constant 63 : index
    %263 = memref.load %arg1[%c63] : memref<205xf32, #tpu.memory_space<smem>>
    %264 = vector.broadcast %263 : f32 to vector<1x128xf32>
    %265 = arith.mulf %51, %264 : vector<1x128xf32>
    %266 = arith.addf %262, %265 : vector<1x128xf32>
    %c64 = arith.constant 64 : index
    %267 = memref.load %arg1[%c64] : memref<205xf32, #tpu.memory_space<smem>>
    %268 = vector.broadcast %267 : f32 to vector<1x128xf32>
    %269 = arith.mulf %63, %268 : vector<1x128xf32>
    %270 = arith.addf %266, %269 : vector<1x128xf32>
    %c65 = arith.constant 65 : index
    %271 = memref.load %arg1[%c65] : memref<205xf32, #tpu.memory_space<smem>>
    %272 = vector.broadcast %271 : f32 to vector<1x128xf32>
    %273 = arith.mulf %75, %272 : vector<1x128xf32>
    %274 = arith.addf %270, %273 : vector<1x128xf32>
    %c66 = arith.constant 66 : index
    %275 = memref.load %arg1[%c66] : memref<205xf32, #tpu.memory_space<smem>>
    %276 = vector.broadcast %275 : f32 to vector<1x128xf32>
    %277 = arith.mulf %87, %276 : vector<1x128xf32>
    %278 = arith.addf %274, %277 : vector<1x128xf32>
    %c67 = arith.constant 67 : index
    %279 = memref.load %arg1[%c67] : memref<205xf32, #tpu.memory_space<smem>>
    %280 = vector.broadcast %279 : f32 to vector<1x128xf32>
    %281 = arith.mulf %99, %280 : vector<1x128xf32>
    %282 = arith.addf %278, %281 : vector<1x128xf32>
    %c68 = arith.constant 68 : index
    %283 = memref.load %arg1[%c68] : memref<205xf32, #tpu.memory_space<smem>>
    %284 = vector.broadcast %283 : f32 to vector<1x128xf32>
    %285 = arith.mulf %111, %284 : vector<1x128xf32>
    %286 = arith.addf %282, %285 : vector<1x128xf32>
    %c69 = arith.constant 69 : index
    %287 = memref.load %arg1[%c69] : memref<205xf32, #tpu.memory_space<smem>>
    %288 = vector.broadcast %287 : f32 to vector<1x128xf32>
    %289 = arith.mulf %123, %288 : vector<1x128xf32>
    %290 = arith.addf %286, %289 : vector<1x128xf32>
    %c70 = arith.constant 70 : index
    %291 = memref.load %arg1[%c70] : memref<205xf32, #tpu.memory_space<smem>>
    %292 = vector.broadcast %291 : f32 to vector<1x128xf32>
    %293 = arith.mulf %135, %292 : vector<1x128xf32>
    %294 = arith.addf %290, %293 : vector<1x128xf32>
    %c71 = arith.constant 71 : index
    %295 = memref.load %arg1[%c71] : memref<205xf32, #tpu.memory_space<smem>>
    %296 = vector.broadcast %295 : f32 to vector<1x128xf32>
    %297 = arith.mulf %147, %296 : vector<1x128xf32>
    %298 = arith.addf %294, %297 : vector<1x128xf32>
    %c182 = arith.constant 182 : index
    %299 = memref.load %arg1[%c182] : memref<205xf32, #tpu.memory_space<smem>>
    %300 = vector.broadcast %299 : f32 to vector<1x128xf32>
    %301 = arith.addf %298, %300 : vector<1x128xf32>
    %cst_19 = arith.constant 0.000000e+00 : f32
    %302 = vector.broadcast %cst_19 : f32 to vector<1x128xf32>
    %303 = arith.maximumf %301, %302 : vector<1x128xf32>
    %c72 = arith.constant 72 : index
    %304 = memref.load %arg1[%c72] : memref<205xf32, #tpu.memory_space<smem>>
    %305 = vector.broadcast %304 : f32 to vector<1x128xf32>
    %306 = arith.mulf %15, %305 : vector<1x128xf32>
    %c73 = arith.constant 73 : index
    %307 = memref.load %arg1[%c73] : memref<205xf32, #tpu.memory_space<smem>>
    %308 = vector.broadcast %307 : f32 to vector<1x128xf32>
    %309 = arith.mulf %27, %308 : vector<1x128xf32>
    %310 = arith.addf %306, %309 : vector<1x128xf32>
    %c74 = arith.constant 74 : index
    %311 = memref.load %arg1[%c74] : memref<205xf32, #tpu.memory_space<smem>>
    %312 = vector.broadcast %311 : f32 to vector<1x128xf32>
    %313 = arith.mulf %39, %312 : vector<1x128xf32>
    %314 = arith.addf %310, %313 : vector<1x128xf32>
    %c75 = arith.constant 75 : index
    %315 = memref.load %arg1[%c75] : memref<205xf32, #tpu.memory_space<smem>>
    %316 = vector.broadcast %315 : f32 to vector<1x128xf32>
    %317 = arith.mulf %51, %316 : vector<1x128xf32>
    %318 = arith.addf %314, %317 : vector<1x128xf32>
    %c76 = arith.constant 76 : index
    %319 = memref.load %arg1[%c76] : memref<205xf32, #tpu.memory_space<smem>>
    %320 = vector.broadcast %319 : f32 to vector<1x128xf32>
    %321 = arith.mulf %63, %320 : vector<1x128xf32>
    %322 = arith.addf %318, %321 : vector<1x128xf32>
    %c77 = arith.constant 77 : index
    %323 = memref.load %arg1[%c77] : memref<205xf32, #tpu.memory_space<smem>>
    %324 = vector.broadcast %323 : f32 to vector<1x128xf32>
    %325 = arith.mulf %75, %324 : vector<1x128xf32>
    %326 = arith.addf %322, %325 : vector<1x128xf32>
    %c78 = arith.constant 78 : index
    %327 = memref.load %arg1[%c78] : memref<205xf32, #tpu.memory_space<smem>>
    %328 = vector.broadcast %327 : f32 to vector<1x128xf32>
    %329 = arith.mulf %87, %328 : vector<1x128xf32>
    %330 = arith.addf %326, %329 : vector<1x128xf32>
    %c79 = arith.constant 79 : index
    %331 = memref.load %arg1[%c79] : memref<205xf32, #tpu.memory_space<smem>>
    %332 = vector.broadcast %331 : f32 to vector<1x128xf32>
    %333 = arith.mulf %99, %332 : vector<1x128xf32>
    %334 = arith.addf %330, %333 : vector<1x128xf32>
    %c80 = arith.constant 80 : index
    %335 = memref.load %arg1[%c80] : memref<205xf32, #tpu.memory_space<smem>>
    %336 = vector.broadcast %335 : f32 to vector<1x128xf32>
    %337 = arith.mulf %111, %336 : vector<1x128xf32>
    %338 = arith.addf %334, %337 : vector<1x128xf32>
    %c81 = arith.constant 81 : index
    %339 = memref.load %arg1[%c81] : memref<205xf32, #tpu.memory_space<smem>>
    %340 = vector.broadcast %339 : f32 to vector<1x128xf32>
    %341 = arith.mulf %123, %340 : vector<1x128xf32>
    %342 = arith.addf %338, %341 : vector<1x128xf32>
    %c82 = arith.constant 82 : index
    %343 = memref.load %arg1[%c82] : memref<205xf32, #tpu.memory_space<smem>>
    %344 = vector.broadcast %343 : f32 to vector<1x128xf32>
    %345 = arith.mulf %135, %344 : vector<1x128xf32>
    %346 = arith.addf %342, %345 : vector<1x128xf32>
    %c83 = arith.constant 83 : index
    %347 = memref.load %arg1[%c83] : memref<205xf32, #tpu.memory_space<smem>>
    %348 = vector.broadcast %347 : f32 to vector<1x128xf32>
    %349 = arith.mulf %147, %348 : vector<1x128xf32>
    %350 = arith.addf %346, %349 : vector<1x128xf32>
    %c183 = arith.constant 183 : index
    %351 = memref.load %arg1[%c183] : memref<205xf32, #tpu.memory_space<smem>>
    %352 = vector.broadcast %351 : f32 to vector<1x128xf32>
    %353 = arith.addf %350, %352 : vector<1x128xf32>
    %cst_20 = arith.constant 0.000000e+00 : f32
    %354 = vector.broadcast %cst_20 : f32 to vector<1x128xf32>
    %355 = arith.maximumf %353, %354 : vector<1x128xf32>
    %c84 = arith.constant 84 : index
    %356 = memref.load %arg1[%c84] : memref<205xf32, #tpu.memory_space<smem>>
    %357 = vector.broadcast %356 : f32 to vector<1x128xf32>
    %358 = arith.mulf %15, %357 : vector<1x128xf32>
    %c85 = arith.constant 85 : index
    %359 = memref.load %arg1[%c85] : memref<205xf32, #tpu.memory_space<smem>>
    %360 = vector.broadcast %359 : f32 to vector<1x128xf32>
    %361 = arith.mulf %27, %360 : vector<1x128xf32>
    %362 = arith.addf %358, %361 : vector<1x128xf32>
    %c86 = arith.constant 86 : index
    %363 = memref.load %arg1[%c86] : memref<205xf32, #tpu.memory_space<smem>>
    %364 = vector.broadcast %363 : f32 to vector<1x128xf32>
    %365 = arith.mulf %39, %364 : vector<1x128xf32>
    %366 = arith.addf %362, %365 : vector<1x128xf32>
    %c87 = arith.constant 87 : index
    %367 = memref.load %arg1[%c87] : memref<205xf32, #tpu.memory_space<smem>>
    %368 = vector.broadcast %367 : f32 to vector<1x128xf32>
    %369 = arith.mulf %51, %368 : vector<1x128xf32>
    %370 = arith.addf %366, %369 : vector<1x128xf32>
    %c88 = arith.constant 88 : index
    %371 = memref.load %arg1[%c88] : memref<205xf32, #tpu.memory_space<smem>>
    %372 = vector.broadcast %371 : f32 to vector<1x128xf32>
    %373 = arith.mulf %63, %372 : vector<1x128xf32>
    %374 = arith.addf %370, %373 : vector<1x128xf32>
    %c89 = arith.constant 89 : index
    %375 = memref.load %arg1[%c89] : memref<205xf32, #tpu.memory_space<smem>>
    %376 = vector.broadcast %375 : f32 to vector<1x128xf32>
    %377 = arith.mulf %75, %376 : vector<1x128xf32>
    %378 = arith.addf %374, %377 : vector<1x128xf32>
    %c90 = arith.constant 90 : index
    %379 = memref.load %arg1[%c90] : memref<205xf32, #tpu.memory_space<smem>>
    %380 = vector.broadcast %379 : f32 to vector<1x128xf32>
    %381 = arith.mulf %87, %380 : vector<1x128xf32>
    %382 = arith.addf %378, %381 : vector<1x128xf32>
    %c91 = arith.constant 91 : index
    %383 = memref.load %arg1[%c91] : memref<205xf32, #tpu.memory_space<smem>>
    %384 = vector.broadcast %383 : f32 to vector<1x128xf32>
    %385 = arith.mulf %99, %384 : vector<1x128xf32>
    %386 = arith.addf %382, %385 : vector<1x128xf32>
    %c92 = arith.constant 92 : index
    %387 = memref.load %arg1[%c92] : memref<205xf32, #tpu.memory_space<smem>>
    %388 = vector.broadcast %387 : f32 to vector<1x128xf32>
    %389 = arith.mulf %111, %388 : vector<1x128xf32>
    %390 = arith.addf %386, %389 : vector<1x128xf32>
    %c93 = arith.constant 93 : index
    %391 = memref.load %arg1[%c93] : memref<205xf32, #tpu.memory_space<smem>>
    %392 = vector.broadcast %391 : f32 to vector<1x128xf32>
    %393 = arith.mulf %123, %392 : vector<1x128xf32>
    %394 = arith.addf %390, %393 : vector<1x128xf32>
    %c94 = arith.constant 94 : index
    %395 = memref.load %arg1[%c94] : memref<205xf32, #tpu.memory_space<smem>>
    %396 = vector.broadcast %395 : f32 to vector<1x128xf32>
    %397 = arith.mulf %135, %396 : vector<1x128xf32>
    %398 = arith.addf %394, %397 : vector<1x128xf32>
    %c95 = arith.constant 95 : index
    %399 = memref.load %arg1[%c95] : memref<205xf32, #tpu.memory_space<smem>>
    %400 = vector.broadcast %399 : f32 to vector<1x128xf32>
    %401 = arith.mulf %147, %400 : vector<1x128xf32>
    %402 = arith.addf %398, %401 : vector<1x128xf32>
    %c184 = arith.constant 184 : index
    %403 = memref.load %arg1[%c184] : memref<205xf32, #tpu.memory_space<smem>>
    %404 = vector.broadcast %403 : f32 to vector<1x128xf32>
    %405 = arith.addf %402, %404 : vector<1x128xf32>
    %cst_21 = arith.constant 0.000000e+00 : f32
    %406 = vector.broadcast %cst_21 : f32 to vector<1x128xf32>
    %407 = arith.maximumf %405, %406 : vector<1x128xf32>
    %c96 = arith.constant 96 : index
    %408 = memref.load %arg1[%c96] : memref<205xf32, #tpu.memory_space<smem>>
    %409 = vector.broadcast %408 : f32 to vector<1x128xf32>
    %410 = arith.mulf %15, %409 : vector<1x128xf32>
    %c97 = arith.constant 97 : index
    %411 = memref.load %arg1[%c97] : memref<205xf32, #tpu.memory_space<smem>>
    %412 = vector.broadcast %411 : f32 to vector<1x128xf32>
    %413 = arith.mulf %27, %412 : vector<1x128xf32>
    %414 = arith.addf %410, %413 : vector<1x128xf32>
    %c98 = arith.constant 98 : index
    %415 = memref.load %arg1[%c98] : memref<205xf32, #tpu.memory_space<smem>>
    %416 = vector.broadcast %415 : f32 to vector<1x128xf32>
    %417 = arith.mulf %39, %416 : vector<1x128xf32>
    %418 = arith.addf %414, %417 : vector<1x128xf32>
    %c99 = arith.constant 99 : index
    %419 = memref.load %arg1[%c99] : memref<205xf32, #tpu.memory_space<smem>>
    %420 = vector.broadcast %419 : f32 to vector<1x128xf32>
    %421 = arith.mulf %51, %420 : vector<1x128xf32>
    %422 = arith.addf %418, %421 : vector<1x128xf32>
    %c100 = arith.constant 100 : index
    %423 = memref.load %arg1[%c100] : memref<205xf32, #tpu.memory_space<smem>>
    %424 = vector.broadcast %423 : f32 to vector<1x128xf32>
    %425 = arith.mulf %63, %424 : vector<1x128xf32>
    %426 = arith.addf %422, %425 : vector<1x128xf32>
    %c101 = arith.constant 101 : index
    %427 = memref.load %arg1[%c101] : memref<205xf32, #tpu.memory_space<smem>>
    %428 = vector.broadcast %427 : f32 to vector<1x128xf32>
    %429 = arith.mulf %75, %428 : vector<1x128xf32>
    %430 = arith.addf %426, %429 : vector<1x128xf32>
    %c102 = arith.constant 102 : index
    %431 = memref.load %arg1[%c102] : memref<205xf32, #tpu.memory_space<smem>>
    %432 = vector.broadcast %431 : f32 to vector<1x128xf32>
    %433 = arith.mulf %87, %432 : vector<1x128xf32>
    %434 = arith.addf %430, %433 : vector<1x128xf32>
    %c103 = arith.constant 103 : index
    %435 = memref.load %arg1[%c103] : memref<205xf32, #tpu.memory_space<smem>>
    %436 = vector.broadcast %435 : f32 to vector<1x128xf32>
    %437 = arith.mulf %99, %436 : vector<1x128xf32>
    %438 = arith.addf %434, %437 : vector<1x128xf32>
    %c104 = arith.constant 104 : index
    %439 = memref.load %arg1[%c104] : memref<205xf32, #tpu.memory_space<smem>>
    %440 = vector.broadcast %439 : f32 to vector<1x128xf32>
    %441 = arith.mulf %111, %440 : vector<1x128xf32>
    %442 = arith.addf %438, %441 : vector<1x128xf32>
    %c105 = arith.constant 105 : index
    %443 = memref.load %arg1[%c105] : memref<205xf32, #tpu.memory_space<smem>>
    %444 = vector.broadcast %443 : f32 to vector<1x128xf32>
    %445 = arith.mulf %123, %444 : vector<1x128xf32>
    %446 = arith.addf %442, %445 : vector<1x128xf32>
    %c106 = arith.constant 106 : index
    %447 = memref.load %arg1[%c106] : memref<205xf32, #tpu.memory_space<smem>>
    %448 = vector.broadcast %447 : f32 to vector<1x128xf32>
    %449 = arith.mulf %135, %448 : vector<1x128xf32>
    %450 = arith.addf %446, %449 : vector<1x128xf32>
    %c107 = arith.constant 107 : index
    %451 = memref.load %arg1[%c107] : memref<205xf32, #tpu.memory_space<smem>>
    %452 = vector.broadcast %451 : f32 to vector<1x128xf32>
    %453 = arith.mulf %147, %452 : vector<1x128xf32>
    %454 = arith.addf %450, %453 : vector<1x128xf32>
    %c185 = arith.constant 185 : index
    %455 = memref.load %arg1[%c185] : memref<205xf32, #tpu.memory_space<smem>>
    %456 = vector.broadcast %455 : f32 to vector<1x128xf32>
    %457 = arith.addf %454, %456 : vector<1x128xf32>
    %cst_22 = arith.constant 0.000000e+00 : f32
    %458 = vector.broadcast %cst_22 : f32 to vector<1x128xf32>
    %459 = arith.maximumf %457, %458 : vector<1x128xf32>
    %c108 = arith.constant 108 : index
    %460 = memref.load %arg1[%c108] : memref<205xf32, #tpu.memory_space<smem>>
    %461 = vector.broadcast %460 : f32 to vector<1x128xf32>
    %462 = arith.mulf %15, %461 : vector<1x128xf32>
    %c109 = arith.constant 109 : index
    %463 = memref.load %arg1[%c109] : memref<205xf32, #tpu.memory_space<smem>>
    %464 = vector.broadcast %463 : f32 to vector<1x128xf32>
    %465 = arith.mulf %27, %464 : vector<1x128xf32>
    %466 = arith.addf %462, %465 : vector<1x128xf32>
    %c110 = arith.constant 110 : index
    %467 = memref.load %arg1[%c110] : memref<205xf32, #tpu.memory_space<smem>>
    %468 = vector.broadcast %467 : f32 to vector<1x128xf32>
    %469 = arith.mulf %39, %468 : vector<1x128xf32>
    %470 = arith.addf %466, %469 : vector<1x128xf32>
    %c111 = arith.constant 111 : index
    %471 = memref.load %arg1[%c111] : memref<205xf32, #tpu.memory_space<smem>>
    %472 = vector.broadcast %471 : f32 to vector<1x128xf32>
    %473 = arith.mulf %51, %472 : vector<1x128xf32>
    %474 = arith.addf %470, %473 : vector<1x128xf32>
    %c112 = arith.constant 112 : index
    %475 = memref.load %arg1[%c112] : memref<205xf32, #tpu.memory_space<smem>>
    %476 = vector.broadcast %475 : f32 to vector<1x128xf32>
    %477 = arith.mulf %63, %476 : vector<1x128xf32>
    %478 = arith.addf %474, %477 : vector<1x128xf32>
    %c113 = arith.constant 113 : index
    %479 = memref.load %arg1[%c113] : memref<205xf32, #tpu.memory_space<smem>>
    %480 = vector.broadcast %479 : f32 to vector<1x128xf32>
    %481 = arith.mulf %75, %480 : vector<1x128xf32>
    %482 = arith.addf %478, %481 : vector<1x128xf32>
    %c114 = arith.constant 114 : index
    %483 = memref.load %arg1[%c114] : memref<205xf32, #tpu.memory_space<smem>>
    %484 = vector.broadcast %483 : f32 to vector<1x128xf32>
    %485 = arith.mulf %87, %484 : vector<1x128xf32>
    %486 = arith.addf %482, %485 : vector<1x128xf32>
    %c115 = arith.constant 115 : index
    %487 = memref.load %arg1[%c115] : memref<205xf32, #tpu.memory_space<smem>>
    %488 = vector.broadcast %487 : f32 to vector<1x128xf32>
    %489 = arith.mulf %99, %488 : vector<1x128xf32>
    %490 = arith.addf %486, %489 : vector<1x128xf32>
    %c116 = arith.constant 116 : index
    %491 = memref.load %arg1[%c116] : memref<205xf32, #tpu.memory_space<smem>>
    %492 = vector.broadcast %491 : f32 to vector<1x128xf32>
    %493 = arith.mulf %111, %492 : vector<1x128xf32>
    %494 = arith.addf %490, %493 : vector<1x128xf32>
    %c117 = arith.constant 117 : index
    %495 = memref.load %arg1[%c117] : memref<205xf32, #tpu.memory_space<smem>>
    %496 = vector.broadcast %495 : f32 to vector<1x128xf32>
    %497 = arith.mulf %123, %496 : vector<1x128xf32>
    %498 = arith.addf %494, %497 : vector<1x128xf32>
    %c118 = arith.constant 118 : index
    %499 = memref.load %arg1[%c118] : memref<205xf32, #tpu.memory_space<smem>>
    %500 = vector.broadcast %499 : f32 to vector<1x128xf32>
    %501 = arith.mulf %135, %500 : vector<1x128xf32>
    %502 = arith.addf %498, %501 : vector<1x128xf32>
    %c119 = arith.constant 119 : index
    %503 = memref.load %arg1[%c119] : memref<205xf32, #tpu.memory_space<smem>>
    %504 = vector.broadcast %503 : f32 to vector<1x128xf32>
    %505 = arith.mulf %147, %504 : vector<1x128xf32>
    %506 = arith.addf %502, %505 : vector<1x128xf32>
    %c186 = arith.constant 186 : index
    %507 = memref.load %arg1[%c186] : memref<205xf32, #tpu.memory_space<smem>>
    %508 = vector.broadcast %507 : f32 to vector<1x128xf32>
    %509 = arith.addf %506, %508 : vector<1x128xf32>
    %cst_23 = arith.constant 0.000000e+00 : f32
    %510 = vector.broadcast %cst_23 : f32 to vector<1x128xf32>
    %511 = arith.maximumf %509, %510 : vector<1x128xf32>
    %c120 = arith.constant 120 : index
    %512 = memref.load %arg1[%c120] : memref<205xf32, #tpu.memory_space<smem>>
    %513 = vector.broadcast %512 : f32 to vector<1x128xf32>
    %514 = arith.mulf %15, %513 : vector<1x128xf32>
    %c121 = arith.constant 121 : index
    %515 = memref.load %arg1[%c121] : memref<205xf32, #tpu.memory_space<smem>>
    %516 = vector.broadcast %515 : f32 to vector<1x128xf32>
    %517 = arith.mulf %27, %516 : vector<1x128xf32>
    %518 = arith.addf %514, %517 : vector<1x128xf32>
    %c122 = arith.constant 122 : index
    %519 = memref.load %arg1[%c122] : memref<205xf32, #tpu.memory_space<smem>>
    %520 = vector.broadcast %519 : f32 to vector<1x128xf32>
    %521 = arith.mulf %39, %520 : vector<1x128xf32>
    %522 = arith.addf %518, %521 : vector<1x128xf32>
    %c123 = arith.constant 123 : index
    %523 = memref.load %arg1[%c123] : memref<205xf32, #tpu.memory_space<smem>>
    %524 = vector.broadcast %523 : f32 to vector<1x128xf32>
    %525 = arith.mulf %51, %524 : vector<1x128xf32>
    %526 = arith.addf %522, %525 : vector<1x128xf32>
    %c124 = arith.constant 124 : index
    %527 = memref.load %arg1[%c124] : memref<205xf32, #tpu.memory_space<smem>>
    %528 = vector.broadcast %527 : f32 to vector<1x128xf32>
    %529 = arith.mulf %63, %528 : vector<1x128xf32>
    %530 = arith.addf %526, %529 : vector<1x128xf32>
    %c125 = arith.constant 125 : index
    %531 = memref.load %arg1[%c125] : memref<205xf32, #tpu.memory_space<smem>>
    %532 = vector.broadcast %531 : f32 to vector<1x128xf32>
    %533 = arith.mulf %75, %532 : vector<1x128xf32>
    %534 = arith.addf %530, %533 : vector<1x128xf32>
    %c126 = arith.constant 126 : index
    %535 = memref.load %arg1[%c126] : memref<205xf32, #tpu.memory_space<smem>>
    %536 = vector.broadcast %535 : f32 to vector<1x128xf32>
    %537 = arith.mulf %87, %536 : vector<1x128xf32>
    %538 = arith.addf %534, %537 : vector<1x128xf32>
    %c127 = arith.constant 127 : index
    %539 = memref.load %arg1[%c127] : memref<205xf32, #tpu.memory_space<smem>>
    %540 = vector.broadcast %539 : f32 to vector<1x128xf32>
    %541 = arith.mulf %99, %540 : vector<1x128xf32>
    %542 = arith.addf %538, %541 : vector<1x128xf32>
    %c128 = arith.constant 128 : index
    %543 = memref.load %arg1[%c128] : memref<205xf32, #tpu.memory_space<smem>>
    %544 = vector.broadcast %543 : f32 to vector<1x128xf32>
    %545 = arith.mulf %111, %544 : vector<1x128xf32>
    %546 = arith.addf %542, %545 : vector<1x128xf32>
    %c129 = arith.constant 129 : index
    %547 = memref.load %arg1[%c129] : memref<205xf32, #tpu.memory_space<smem>>
    %548 = vector.broadcast %547 : f32 to vector<1x128xf32>
    %549 = arith.mulf %123, %548 : vector<1x128xf32>
    %550 = arith.addf %546, %549 : vector<1x128xf32>
    %c130 = arith.constant 130 : index
    %551 = memref.load %arg1[%c130] : memref<205xf32, #tpu.memory_space<smem>>
    %552 = vector.broadcast %551 : f32 to vector<1x128xf32>
    %553 = arith.mulf %135, %552 : vector<1x128xf32>
    %554 = arith.addf %550, %553 : vector<1x128xf32>
    %c131 = arith.constant 131 : index
    %555 = memref.load %arg1[%c131] : memref<205xf32, #tpu.memory_space<smem>>
    %556 = vector.broadcast %555 : f32 to vector<1x128xf32>
    %557 = arith.mulf %147, %556 : vector<1x128xf32>
    %558 = arith.addf %554, %557 : vector<1x128xf32>
    %c187 = arith.constant 187 : index
    %559 = memref.load %arg1[%c187] : memref<205xf32, #tpu.memory_space<smem>>
    %560 = vector.broadcast %559 : f32 to vector<1x128xf32>
    %561 = arith.addf %558, %560 : vector<1x128xf32>
    %cst_24 = arith.constant 0.000000e+00 : f32
    %562 = vector.broadcast %cst_24 : f32 to vector<1x128xf32>
    %563 = arith.maximumf %561, %562 : vector<1x128xf32>
    %c132 = arith.constant 132 : index
    %564 = memref.load %arg1[%c132] : memref<205xf32, #tpu.memory_space<smem>>
    %565 = vector.broadcast %564 : f32 to vector<1x128xf32>
    %566 = arith.mulf %15, %565 : vector<1x128xf32>
    %c133 = arith.constant 133 : index
    %567 = memref.load %arg1[%c133] : memref<205xf32, #tpu.memory_space<smem>>
    %568 = vector.broadcast %567 : f32 to vector<1x128xf32>
    %569 = arith.mulf %27, %568 : vector<1x128xf32>
    %570 = arith.addf %566, %569 : vector<1x128xf32>
    %c134 = arith.constant 134 : index
    %571 = memref.load %arg1[%c134] : memref<205xf32, #tpu.memory_space<smem>>
    %572 = vector.broadcast %571 : f32 to vector<1x128xf32>
    %573 = arith.mulf %39, %572 : vector<1x128xf32>
    %574 = arith.addf %570, %573 : vector<1x128xf32>
    %c135 = arith.constant 135 : index
    %575 = memref.load %arg1[%c135] : memref<205xf32, #tpu.memory_space<smem>>
    %576 = vector.broadcast %575 : f32 to vector<1x128xf32>
    %577 = arith.mulf %51, %576 : vector<1x128xf32>
    %578 = arith.addf %574, %577 : vector<1x128xf32>
    %c136 = arith.constant 136 : index
    %579 = memref.load %arg1[%c136] : memref<205xf32, #tpu.memory_space<smem>>
    %580 = vector.broadcast %579 : f32 to vector<1x128xf32>
    %581 = arith.mulf %63, %580 : vector<1x128xf32>
    %582 = arith.addf %578, %581 : vector<1x128xf32>
    %c137 = arith.constant 137 : index
    %583 = memref.load %arg1[%c137] : memref<205xf32, #tpu.memory_space<smem>>
    %584 = vector.broadcast %583 : f32 to vector<1x128xf32>
    %585 = arith.mulf %75, %584 : vector<1x128xf32>
    %586 = arith.addf %582, %585 : vector<1x128xf32>
    %c138 = arith.constant 138 : index
    %587 = memref.load %arg1[%c138] : memref<205xf32, #tpu.memory_space<smem>>
    %588 = vector.broadcast %587 : f32 to vector<1x128xf32>
    %589 = arith.mulf %87, %588 : vector<1x128xf32>
    %590 = arith.addf %586, %589 : vector<1x128xf32>
    %c139 = arith.constant 139 : index
    %591 = memref.load %arg1[%c139] : memref<205xf32, #tpu.memory_space<smem>>
    %592 = vector.broadcast %591 : f32 to vector<1x128xf32>
    %593 = arith.mulf %99, %592 : vector<1x128xf32>
    %594 = arith.addf %590, %593 : vector<1x128xf32>
    %c140 = arith.constant 140 : index
    %595 = memref.load %arg1[%c140] : memref<205xf32, #tpu.memory_space<smem>>
    %596 = vector.broadcast %595 : f32 to vector<1x128xf32>
    %597 = arith.mulf %111, %596 : vector<1x128xf32>
    %598 = arith.addf %594, %597 : vector<1x128xf32>
    %c141 = arith.constant 141 : index
    %599 = memref.load %arg1[%c141] : memref<205xf32, #tpu.memory_space<smem>>
    %600 = vector.broadcast %599 : f32 to vector<1x128xf32>
    %601 = arith.mulf %123, %600 : vector<1x128xf32>
    %602 = arith.addf %598, %601 : vector<1x128xf32>
    %c142 = arith.constant 142 : index
    %603 = memref.load %arg1[%c142] : memref<205xf32, #tpu.memory_space<smem>>
    %604 = vector.broadcast %603 : f32 to vector<1x128xf32>
    %605 = arith.mulf %135, %604 : vector<1x128xf32>
    %606 = arith.addf %602, %605 : vector<1x128xf32>
    %c143 = arith.constant 143 : index
    %607 = memref.load %arg1[%c143] : memref<205xf32, #tpu.memory_space<smem>>
    %608 = vector.broadcast %607 : f32 to vector<1x128xf32>
    %609 = arith.mulf %147, %608 : vector<1x128xf32>
    %610 = arith.addf %606, %609 : vector<1x128xf32>
    %c188 = arith.constant 188 : index
    %611 = memref.load %arg1[%c188] : memref<205xf32, #tpu.memory_space<smem>>
    %612 = vector.broadcast %611 : f32 to vector<1x128xf32>
    %613 = arith.addf %610, %612 : vector<1x128xf32>
    %cst_25 = arith.constant 0.000000e+00 : f32
    %614 = vector.broadcast %cst_25 : f32 to vector<1x128xf32>
    %615 = arith.maximumf %613, %614 : vector<1x128xf32>
    %c144 = arith.constant 144 : index
    %616 = memref.load %arg1[%c144] : memref<205xf32, #tpu.memory_space<smem>>
    %617 = vector.broadcast %616 : f32 to vector<1x128xf32>
    %618 = arith.mulf %15, %617 : vector<1x128xf32>
    %c145 = arith.constant 145 : index
    %619 = memref.load %arg1[%c145] : memref<205xf32, #tpu.memory_space<smem>>
    %620 = vector.broadcast %619 : f32 to vector<1x128xf32>
    %621 = arith.mulf %27, %620 : vector<1x128xf32>
    %622 = arith.addf %618, %621 : vector<1x128xf32>
    %c146 = arith.constant 146 : index
    %623 = memref.load %arg1[%c146] : memref<205xf32, #tpu.memory_space<smem>>
    %624 = vector.broadcast %623 : f32 to vector<1x128xf32>
    %625 = arith.mulf %39, %624 : vector<1x128xf32>
    %626 = arith.addf %622, %625 : vector<1x128xf32>
    %c147 = arith.constant 147 : index
    %627 = memref.load %arg1[%c147] : memref<205xf32, #tpu.memory_space<smem>>
    %628 = vector.broadcast %627 : f32 to vector<1x128xf32>
    %629 = arith.mulf %51, %628 : vector<1x128xf32>
    %630 = arith.addf %626, %629 : vector<1x128xf32>
    %c148 = arith.constant 148 : index
    %631 = memref.load %arg1[%c148] : memref<205xf32, #tpu.memory_space<smem>>
    %632 = vector.broadcast %631 : f32 to vector<1x128xf32>
    %633 = arith.mulf %63, %632 : vector<1x128xf32>
    %634 = arith.addf %630, %633 : vector<1x128xf32>
    %c149 = arith.constant 149 : index
    %635 = memref.load %arg1[%c149] : memref<205xf32, #tpu.memory_space<smem>>
    %636 = vector.broadcast %635 : f32 to vector<1x128xf32>
    %637 = arith.mulf %75, %636 : vector<1x128xf32>
    %638 = arith.addf %634, %637 : vector<1x128xf32>
    %c150 = arith.constant 150 : index
    %639 = memref.load %arg1[%c150] : memref<205xf32, #tpu.memory_space<smem>>
    %640 = vector.broadcast %639 : f32 to vector<1x128xf32>
    %641 = arith.mulf %87, %640 : vector<1x128xf32>
    %642 = arith.addf %638, %641 : vector<1x128xf32>
    %c151 = arith.constant 151 : index
    %643 = memref.load %arg1[%c151] : memref<205xf32, #tpu.memory_space<smem>>
    %644 = vector.broadcast %643 : f32 to vector<1x128xf32>
    %645 = arith.mulf %99, %644 : vector<1x128xf32>
    %646 = arith.addf %642, %645 : vector<1x128xf32>
    %c152 = arith.constant 152 : index
    %647 = memref.load %arg1[%c152] : memref<205xf32, #tpu.memory_space<smem>>
    %648 = vector.broadcast %647 : f32 to vector<1x128xf32>
    %649 = arith.mulf %111, %648 : vector<1x128xf32>
    %650 = arith.addf %646, %649 : vector<1x128xf32>
    %c153 = arith.constant 153 : index
    %651 = memref.load %arg1[%c153] : memref<205xf32, #tpu.memory_space<smem>>
    %652 = vector.broadcast %651 : f32 to vector<1x128xf32>
    %653 = arith.mulf %123, %652 : vector<1x128xf32>
    %654 = arith.addf %650, %653 : vector<1x128xf32>
    %c154 = arith.constant 154 : index
    %655 = memref.load %arg1[%c154] : memref<205xf32, #tpu.memory_space<smem>>
    %656 = vector.broadcast %655 : f32 to vector<1x128xf32>
    %657 = arith.mulf %135, %656 : vector<1x128xf32>
    %658 = arith.addf %654, %657 : vector<1x128xf32>
    %c155 = arith.constant 155 : index
    %659 = memref.load %arg1[%c155] : memref<205xf32, #tpu.memory_space<smem>>
    %660 = vector.broadcast %659 : f32 to vector<1x128xf32>
    %661 = arith.mulf %147, %660 : vector<1x128xf32>
    %662 = arith.addf %658, %661 : vector<1x128xf32>
    %c189 = arith.constant 189 : index
    %663 = memref.load %arg1[%c189] : memref<205xf32, #tpu.memory_space<smem>>
    %664 = vector.broadcast %663 : f32 to vector<1x128xf32>
    %665 = arith.addf %662, %664 : vector<1x128xf32>
    %cst_26 = arith.constant 0.000000e+00 : f32
    %666 = vector.broadcast %cst_26 : f32 to vector<1x128xf32>
    %667 = arith.maximumf %665, %666 : vector<1x128xf32>
    %c156 = arith.constant 156 : index
    %668 = memref.load %arg1[%c156] : memref<205xf32, #tpu.memory_space<smem>>
    %669 = vector.broadcast %668 : f32 to vector<1x128xf32>
    %670 = arith.mulf %15, %669 : vector<1x128xf32>
    %c157 = arith.constant 157 : index
    %671 = memref.load %arg1[%c157] : memref<205xf32, #tpu.memory_space<smem>>
    %672 = vector.broadcast %671 : f32 to vector<1x128xf32>
    %673 = arith.mulf %27, %672 : vector<1x128xf32>
    %674 = arith.addf %670, %673 : vector<1x128xf32>
    %c158 = arith.constant 158 : index
    %675 = memref.load %arg1[%c158] : memref<205xf32, #tpu.memory_space<smem>>
    %676 = vector.broadcast %675 : f32 to vector<1x128xf32>
    %677 = arith.mulf %39, %676 : vector<1x128xf32>
    %678 = arith.addf %674, %677 : vector<1x128xf32>
    %c159 = arith.constant 159 : index
    %679 = memref.load %arg1[%c159] : memref<205xf32, #tpu.memory_space<smem>>
    %680 = vector.broadcast %679 : f32 to vector<1x128xf32>
    %681 = arith.mulf %51, %680 : vector<1x128xf32>
    %682 = arith.addf %678, %681 : vector<1x128xf32>
    %c160 = arith.constant 160 : index
    %683 = memref.load %arg1[%c160] : memref<205xf32, #tpu.memory_space<smem>>
    %684 = vector.broadcast %683 : f32 to vector<1x128xf32>
    %685 = arith.mulf %63, %684 : vector<1x128xf32>
    %686 = arith.addf %682, %685 : vector<1x128xf32>
    %c161 = arith.constant 161 : index
    %687 = memref.load %arg1[%c161] : memref<205xf32, #tpu.memory_space<smem>>
    %688 = vector.broadcast %687 : f32 to vector<1x128xf32>
    %689 = arith.mulf %75, %688 : vector<1x128xf32>
    %690 = arith.addf %686, %689 : vector<1x128xf32>
    %c162 = arith.constant 162 : index
    %691 = memref.load %arg1[%c162] : memref<205xf32, #tpu.memory_space<smem>>
    %692 = vector.broadcast %691 : f32 to vector<1x128xf32>
    %693 = arith.mulf %87, %692 : vector<1x128xf32>
    %694 = arith.addf %690, %693 : vector<1x128xf32>
    %c163 = arith.constant 163 : index
    %695 = memref.load %arg1[%c163] : memref<205xf32, #tpu.memory_space<smem>>
    %696 = vector.broadcast %695 : f32 to vector<1x128xf32>
    %697 = arith.mulf %99, %696 : vector<1x128xf32>
    %698 = arith.addf %694, %697 : vector<1x128xf32>
    %c164 = arith.constant 164 : index
    %699 = memref.load %arg1[%c164] : memref<205xf32, #tpu.memory_space<smem>>
    %700 = vector.broadcast %699 : f32 to vector<1x128xf32>
    %701 = arith.mulf %111, %700 : vector<1x128xf32>
    %702 = arith.addf %698, %701 : vector<1x128xf32>
    %c165 = arith.constant 165 : index
    %703 = memref.load %arg1[%c165] : memref<205xf32, #tpu.memory_space<smem>>
    %704 = vector.broadcast %703 : f32 to vector<1x128xf32>
    %705 = arith.mulf %123, %704 : vector<1x128xf32>
    %706 = arith.addf %702, %705 : vector<1x128xf32>
    %c166 = arith.constant 166 : index
    %707 = memref.load %arg1[%c166] : memref<205xf32, #tpu.memory_space<smem>>
    %708 = vector.broadcast %707 : f32 to vector<1x128xf32>
    %709 = arith.mulf %135, %708 : vector<1x128xf32>
    %710 = arith.addf %706, %709 : vector<1x128xf32>
    %c167 = arith.constant 167 : index
    %711 = memref.load %arg1[%c167] : memref<205xf32, #tpu.memory_space<smem>>
    %712 = vector.broadcast %711 : f32 to vector<1x128xf32>
    %713 = arith.mulf %147, %712 : vector<1x128xf32>
    %714 = arith.addf %710, %713 : vector<1x128xf32>
    %c190 = arith.constant 190 : index
    %715 = memref.load %arg1[%c190] : memref<205xf32, #tpu.memory_space<smem>>
    %716 = vector.broadcast %715 : f32 to vector<1x128xf32>
    %717 = arith.addf %714, %716 : vector<1x128xf32>
    %cst_27 = arith.constant 0.000000e+00 : f32
    %718 = vector.broadcast %cst_27 : f32 to vector<1x128xf32>
    %719 = arith.maximumf %717, %718 : vector<1x128xf32>
    %c168 = arith.constant 168 : index
    %720 = memref.load %arg1[%c168] : memref<205xf32, #tpu.memory_space<smem>>
    %721 = vector.broadcast %720 : f32 to vector<1x128xf32>
    %722 = arith.mulf %15, %721 : vector<1x128xf32>
    %c169 = arith.constant 169 : index
    %723 = memref.load %arg1[%c169] : memref<205xf32, #tpu.memory_space<smem>>
    %724 = vector.broadcast %723 : f32 to vector<1x128xf32>
    %725 = arith.mulf %27, %724 : vector<1x128xf32>
    %726 = arith.addf %722, %725 : vector<1x128xf32>
    %c170 = arith.constant 170 : index
    %727 = memref.load %arg1[%c170] : memref<205xf32, #tpu.memory_space<smem>>
    %728 = vector.broadcast %727 : f32 to vector<1x128xf32>
    %729 = arith.mulf %39, %728 : vector<1x128xf32>
    %730 = arith.addf %726, %729 : vector<1x128xf32>
    %c171 = arith.constant 171 : index
    %731 = memref.load %arg1[%c171] : memref<205xf32, #tpu.memory_space<smem>>
    %732 = vector.broadcast %731 : f32 to vector<1x128xf32>
    %733 = arith.mulf %51, %732 : vector<1x128xf32>
    %734 = arith.addf %730, %733 : vector<1x128xf32>
    %c172 = arith.constant 172 : index
    %735 = memref.load %arg1[%c172] : memref<205xf32, #tpu.memory_space<smem>>
    %736 = vector.broadcast %735 : f32 to vector<1x128xf32>
    %737 = arith.mulf %63, %736 : vector<1x128xf32>
    %738 = arith.addf %734, %737 : vector<1x128xf32>
    %c173 = arith.constant 173 : index
    %739 = memref.load %arg1[%c173] : memref<205xf32, #tpu.memory_space<smem>>
    %740 = vector.broadcast %739 : f32 to vector<1x128xf32>
    %741 = arith.mulf %75, %740 : vector<1x128xf32>
    %742 = arith.addf %738, %741 : vector<1x128xf32>
    %c174 = arith.constant 174 : index
    %743 = memref.load %arg1[%c174] : memref<205xf32, #tpu.memory_space<smem>>
    %744 = vector.broadcast %743 : f32 to vector<1x128xf32>
    %745 = arith.mulf %87, %744 : vector<1x128xf32>
    %746 = arith.addf %742, %745 : vector<1x128xf32>
    %c175 = arith.constant 175 : index
    %747 = memref.load %arg1[%c175] : memref<205xf32, #tpu.memory_space<smem>>
    %748 = vector.broadcast %747 : f32 to vector<1x128xf32>
    %749 = arith.mulf %99, %748 : vector<1x128xf32>
    %750 = arith.addf %746, %749 : vector<1x128xf32>
    %c176 = arith.constant 176 : index
    %751 = memref.load %arg1[%c176] : memref<205xf32, #tpu.memory_space<smem>>
    %752 = vector.broadcast %751 : f32 to vector<1x128xf32>
    %753 = arith.mulf %111, %752 : vector<1x128xf32>
    %754 = arith.addf %750, %753 : vector<1x128xf32>
    %c177 = arith.constant 177 : index
    %755 = memref.load %arg1[%c177] : memref<205xf32, #tpu.memory_space<smem>>
    %756 = vector.broadcast %755 : f32 to vector<1x128xf32>
    %757 = arith.mulf %123, %756 : vector<1x128xf32>
    %758 = arith.addf %754, %757 : vector<1x128xf32>
    %c178 = arith.constant 178 : index
    %759 = memref.load %arg1[%c178] : memref<205xf32, #tpu.memory_space<smem>>
    %760 = vector.broadcast %759 : f32 to vector<1x128xf32>
    %761 = arith.mulf %135, %760 : vector<1x128xf32>
    %762 = arith.addf %758, %761 : vector<1x128xf32>
    %c179 = arith.constant 179 : index
    %763 = memref.load %arg1[%c179] : memref<205xf32, #tpu.memory_space<smem>>
    %764 = vector.broadcast %763 : f32 to vector<1x128xf32>
    %765 = arith.mulf %147, %764 : vector<1x128xf32>
    %766 = arith.addf %762, %765 : vector<1x128xf32>
    %c191 = arith.constant 191 : index
    %767 = memref.load %arg1[%c191] : memref<205xf32, #tpu.memory_space<smem>>
    %768 = vector.broadcast %767 : f32 to vector<1x128xf32>
    %769 = arith.addf %766, %768 : vector<1x128xf32>
    %cst_28 = arith.constant 0.000000e+00 : f32
    %770 = vector.broadcast %cst_28 : f32 to vector<1x128xf32>
    %771 = arith.maximumf %769, %770 : vector<1x128xf32>
    %c192 = arith.constant 192 : index
    %772 = memref.load %arg1[%c192] : memref<205xf32, #tpu.memory_space<smem>>
    %773 = vector.broadcast %772 : f32 to vector<1x128xf32>
    %774 = arith.mulf %199, %773 : vector<1x128xf32>
    %c193 = arith.constant 193 : index
    %775 = memref.load %arg1[%c193] : memref<205xf32, #tpu.memory_space<smem>>
    %776 = vector.broadcast %775 : f32 to vector<1x128xf32>
    %777 = arith.mulf %251, %776 : vector<1x128xf32>
    %778 = arith.addf %774, %777 : vector<1x128xf32>
    %c194 = arith.constant 194 : index
    %779 = memref.load %arg1[%c194] : memref<205xf32, #tpu.memory_space<smem>>
    %780 = vector.broadcast %779 : f32 to vector<1x128xf32>
    %781 = arith.mulf %303, %780 : vector<1x128xf32>
    %782 = arith.addf %778, %781 : vector<1x128xf32>
    %c195 = arith.constant 195 : index
    %783 = memref.load %arg1[%c195] : memref<205xf32, #tpu.memory_space<smem>>
    %784 = vector.broadcast %783 : f32 to vector<1x128xf32>
    %785 = arith.mulf %355, %784 : vector<1x128xf32>
    %786 = arith.addf %782, %785 : vector<1x128xf32>
    %c196 = arith.constant 196 : index
    %787 = memref.load %arg1[%c196] : memref<205xf32, #tpu.memory_space<smem>>
    %788 = vector.broadcast %787 : f32 to vector<1x128xf32>
    %789 = arith.mulf %407, %788 : vector<1x128xf32>
    %790 = arith.addf %786, %789 : vector<1x128xf32>
    %c197 = arith.constant 197 : index
    %791 = memref.load %arg1[%c197] : memref<205xf32, #tpu.memory_space<smem>>
    %792 = vector.broadcast %791 : f32 to vector<1x128xf32>
    %793 = arith.mulf %459, %792 : vector<1x128xf32>
    %794 = arith.addf %790, %793 : vector<1x128xf32>
    %c198 = arith.constant 198 : index
    %795 = memref.load %arg1[%c198] : memref<205xf32, #tpu.memory_space<smem>>
    %796 = vector.broadcast %795 : f32 to vector<1x128xf32>
    %797 = arith.mulf %511, %796 : vector<1x128xf32>
    %798 = arith.addf %794, %797 : vector<1x128xf32>
    %c199 = arith.constant 199 : index
    %799 = memref.load %arg1[%c199] : memref<205xf32, #tpu.memory_space<smem>>
    %800 = vector.broadcast %799 : f32 to vector<1x128xf32>
    %801 = arith.mulf %563, %800 : vector<1x128xf32>
    %802 = arith.addf %798, %801 : vector<1x128xf32>
    %c200 = arith.constant 200 : index
    %803 = memref.load %arg1[%c200] : memref<205xf32, #tpu.memory_space<smem>>
    %804 = vector.broadcast %803 : f32 to vector<1x128xf32>
    %805 = arith.mulf %615, %804 : vector<1x128xf32>
    %806 = arith.addf %802, %805 : vector<1x128xf32>
    %c201 = arith.constant 201 : index
    %807 = memref.load %arg1[%c201] : memref<205xf32, #tpu.memory_space<smem>>
    %808 = vector.broadcast %807 : f32 to vector<1x128xf32>
    %809 = arith.mulf %667, %808 : vector<1x128xf32>
    %810 = arith.addf %806, %809 : vector<1x128xf32>
    %c202 = arith.constant 202 : index
    %811 = memref.load %arg1[%c202] : memref<205xf32, #tpu.memory_space<smem>>
    %812 = vector.broadcast %811 : f32 to vector<1x128xf32>
    %813 = arith.mulf %719, %812 : vector<1x128xf32>
    %814 = arith.addf %810, %813 : vector<1x128xf32>
    %c203 = arith.constant 203 : index
    %815 = memref.load %arg1[%c203] : memref<205xf32, #tpu.memory_space<smem>>
    %816 = vector.broadcast %815 : f32 to vector<1x128xf32>
    %817 = arith.mulf %771, %816 : vector<1x128xf32>
    %818 = arith.addf %814, %817 : vector<1x128xf32>
    %c204 = arith.constant 204 : index
    %819 = memref.load %arg1[%c204] : memref<205xf32, #tpu.memory_space<smem>>
    %820 = vector.broadcast %819 : f32 to vector<1x128xf32>
    %821 = arith.addf %818, %820 : vector<1x128xf32>
    %c0_29 = arith.constant 0 : index
    %c0_30 = arith.constant 0 : index
    %822 = vector.load %arg3[%c0_29, %c0_30] : memref<1x128xf32, #tpu.memory_space<vmem>>, vector<1x128xf32>
    tpu.vector_store %arg3[%c0_29, %c0_30], %821 {strides = array<i32>} : memref<1x128xf32, #tpu.memory_space<vmem>>, vector<1x128xf32>,
    return
  }
  func.func @transform_0(%arg0: i32) -> i32 {
    %c0_i32 = arith.constant 0 : i32
    %c0_i32_0 = arith.constant 0 : i32
    return %c0_i32 : i32
  }
  func.func @transform_1(%arg0: i32) -> (i32, i32, i32) {
    %c0_i32 = arith.constant 0 : i32
    %c0_i32_0 = arith.constant 0 : i32
    %c0_i32_1 = arith.constant 0 : i32
    return %c0_i32, %arg0, %c0_i32_0 : i32, i32, i32
  }
  func.func @transform_2(%arg0: i32) -> (i32, i32) {
    %c0_i32 = arith.constant 0 : i32
    %c0_i32_0 = arith.constant 0 : i32
    return %arg0, %c0_i32 : i32, i32
  }
}

</mosaic_0001>

<llo_original>
// kernel: tpu_custom_call.1
$region0: #{tpu_custom_call.1}
  #allocation0 [shape = 'u32[]', space=smem, size = 0x4, offset = 0x4, fixed_abs, tag = 'smem constant byte address 0x4 - core index']
  #allocation1 [shape = 'u32[144,128]{1,0:T(1,128)}', space=vmem, size = 0x12000, scoped, tag = 'internal scratch']
  %s0 = inlined_call_operand.hbm [shape: f32[205], index: 0, kind: input, shape index: {}]
  %s1 = inlined_call_operand.vmem [shape: f32[2,1,128], index: 1, kind: input, shape index: {}]
  %s2 = inlined_call_operand.hbm [shape: f32[1,128], index: 2, kind: output, shape index: {}]
  %s3 = sld [smem:[#allocation0]]
  $region22: #{tpu_custom_call.1} parent=0
    _
  %s5 = ssub.s32 1, %s3
  %s6 = scalar_select 0, %s5, %s3
  $region1: #{tpu_custom_call.1} parent=0
    #allocation2 [shape = 'u8[1024]{0}', space=smem, size = 0x400, scoped, tag = 'input window, operand 0, single buffered']
    #allocation3 [shape = 's32[1]{0}', space=sflag, size = 0x4, scoped, tag = 'scoped memory for tpu_custom_call.1']
    #allocation4 [shape = 's32[1]{0}', space=sflag, size = 0x4, scoped, tag = 'scoped memory for tpu_custom_call.1']
    #allocation5 [shape = 'u8[512]{0}', space=vmem, size = 0x400, scoped, tag = 'output window, operand 0, single buffered']
    %7 = vsyncpa [#allocation4], 0
    %8 = vsyncpa [#allocation3], 0
    // Predicated region
    $region2: #{tpu_custom_call.1} parent=1 // pred_check
      _
    $region3: #{tpu_custom_call.1} parent=1 // pred_check_branch
      %10 = sbr.rel (0) target = $region5
    $region4: #{tpu_custom_call.1} parent=1 // pred_region
      %s12 = ssub.s32 32, 32
      %13 = vsyncadd [#allocation4], %s12
      %16 = dma.hbm_to_smem %s0, 32, [#allocation2], [#allocation4]
    $region5: #{tpu_custom_call.1} parent=1 // pred_fallthru
      _
    // Predicated region
    $region6: #{tpu_custom_call.1} parent=1 // pred_check
      _
    $region7: #{tpu_custom_call.1} parent=1 // pred_check_branch
      %18 = sbr.rel (0) target = $region9
    $region8: #{tpu_custom_call.1} parent=1 // pred_region
      _
    $region9: #{tpu_custom_call.1} parent=1 // pred_fallthru
      _
    // Predicated region
    $region10: #{tpu_custom_call.1} parent=1 // pred_check
      _
    $region11: #{tpu_custom_call.1} parent=1 // pred_check_branch
      %20 = sbr.rel (0) target = $region13
    $region12: #{tpu_custom_call.1} parent=1 // pred_region
      %21 = dma.done [#allocation4], 32
    $region13: #{tpu_custom_call.1} parent=1 // pred_fallthru
      _
    %22 = sfence
    %v23 = vld [vmem:[%s1] sm:$0x1]
    %s24 = scalar_lea.vmem %s1, 1
    %v25 = vld [vmem:[%s24] sm:$0x1]
    %s26 = sld [smem:[#allocation2]]
    %v27 = vstv %s26
    %v28 = vmul.f32 %v23, %v27
    %s29 = sld [smem:[#allocation2 + $0x1]]
    %v30 = vstv %s29
    %v31 = vmul.f32 %v25, %v30
    %v32 = vadd.f32 %v28, %v31
    %s33 = sld [smem:[#allocation2 + $0x18]]
    %v34 = vstv %s33
    %v35 = vadd.f32 %v32, %v34
    %v36 = vmax.f32 %v35, 0.0
    %s37 = sld [smem:[#allocation2 + $0x2]]
    %v38 = vstv %s37
    %v39 = vmul.f32 %v23, %v38
    %s40 = sld [smem:[#allocation2 + $0x3]]
    %v41 = vstv %s40
    %v42 = vmul.f32 %v25, %v41
    %v43 = vadd.f32 %v39, %v42
    %s44 = sld [smem:[#allocation2 + $0x19]]
    %v45 = vstv %s44
    %v46 = vadd.f32 %v43, %v45
    %v47 = vmax.f32 %v46, 0.0
    %s48 = sld [smem:[#allocation2 + $0x4]]
    %v49 = vstv %s48
    %v50 = vmul.f32 %v23, %v49
    %s51 = sld [smem:[#allocation2 + $0x5]]
    %v52 = vstv %s51
    %v53 = vmul.f32 %v25, %v52
    %v54 = vadd.f32 %v50, %v53
    %s55 = sld [smem:[#allocation2 + $0x1a]]
    %v56 = vstv %s55
    %v57 = vadd.f32 %v54, %v56
    %v58 = vmax.f32 %v57, 0.0
    %s59 = sld [smem:[#allocation2 + $0x6]]
    %v60 = vstv %s59
    %v61 = vmul.f32 %v23, %v60
    %s62 = sld [smem:[#allocation2 + $0x7]]
    %v63 = vstv %s62
    %v64 = vmul.f32 %v25, %v63
    %v65 = vadd.f32 %v61, %v64
    %s66 = sld [smem:[#allocation2 + $0x1b]]
    %v67 = vstv %s66
    %v68 = vadd.f32 %v65, %v67
    %v69 = vmax.f32 %v68, 0.0
    %s70 = sld [smem:[#allocation2 + $0x8]]
    %v71 = vstv %s70
    %v72 = vmul.f32 %v23, %v71
    %s73 = sld [smem:[#allocation2 + $0x9]]
    %v74 = vstv %s73
    %v75 = vmul.f32 %v25, %v74
    %v76 = vadd.f32 %v72, %v75
    %s77 = sld [smem:[#allocation2 + $0x1c]]
    %v78 = vstv %s77
    %v79 = vadd.f32 %v76, %v78
    %v80 = vmax.f32 %v79, 0.0
    %s81 = sld [smem:[#allocation2 + $0xa]]
    %v82 = vstv %s81
    %v83 = vmul.f32 %v23, %v82
    %s84 = sld [smem:[#allocation2 + $0xb]]
    %v85 = vstv %s84
    %v86 = vmul.f32 %v25, %v85
    %v87 = vadd.f32 %v83, %v86
    %s88 = sld [smem:[#allocation2 + $0x1d]]
    %v89 = vstv %s88
    %v90 = vadd.f32 %v87, %v89
    %v91 = vmax.f32 %v90, 0.0
    %s92 = sld [smem:[#allocation2 + $0xc]]
    %v93 = vstv %s92
    %v94 = vmul.f32 %v23, %v93
    %s95 = sld [smem:[#allocation2 + $0xd]]
    %v96 = vstv %s95
    %v97 = vmul.f32 %v25, %v96
    %v98 = vadd.f32 %v94, %v97
    %s99 = sld [smem:[#allocation2 + $0x1e]]
    %v100 = vstv %s99
    %v101 = vadd.f32 %v98, %v100
    %v102 = vmax.f32 %v101, 0.0
    %s103 = sld [smem:[#allocation2 + $0xe]]
    %v104 = vstv %s103
    %v105 = vmul.f32 %v23, %v104
    %s106 = sld [smem:[#allocation2 + $0xf]]
    %v107 = vstv %s106
    %v108 = vmul.f32 %v25, %v107
    %v109 = vadd.f32 %v105, %v108
    %s110 = sld [smem:[#allocation2 + $0x1f]]
    %v111 = vstv %s110
    %v112 = vadd.f32 %v109, %v111
    %v113 = vmax.f32 %v112, 0.0
    %s114 = sld [smem:[#allocation2 + $0x10]]
    %v115 = vstv %s114
    %v116 = vmul.f32 %v23, %v115
    %s117 = sld [smem:[#allocation2 + $0x11]]
    %v118 = vstv %s117
    %v119 = vmul.f32 %v25, %v118
    %v120 = vadd.f32 %v116, %v119
    %s121 = sld [smem:[#allocation2 + $0x20]]
    %v122 = vstv %s121
    %v123 = vadd.f32 %v120, %v122
    %v124 = vmax.f32 %v123, 0.0
    %s125 = sld [smem:[#allocation2 + $0x12]]
    %v126 = vstv %s125
    %v127 = vmul.f32 %v23, %v126
    %s128 = sld [smem:[#allocation2 + $0x13]]
    %v129 = vstv %s128
    %v130 = vmul.f32 %v25, %v129
    %v131 = vadd.f32 %v127, %v130
    %s132 = sld [smem:[#allocation2 + $0x21]]
    %v133 = vstv %s132
    %v134 = vadd.f32 %v131, %v133
    %v135 = vmax.f32 %v134, 0.0
    %s136 = sld [smem:[#allocation2 + $0x14]]
    %v137 = vstv %s136
    %v138 = vmul.f32 %v23, %v137
    %s139 = sld [smem:[#allocation2 + $0x15]]
    %v140 = vstv %s139
    %v141 = vmul.f32 %v25, %v140
    %v142 = vadd.f32 %v138, %v141
    %s143 = sld [smem:[#allocation2 + $0x22]]
    %v144 = vstv %s143
    %v145 = vadd.f32 %v142, %v144
    %v146 = vmax.f32 %v145, 0.0
    %s147 = sld [smem:[#allocation2 + $0x16]]
    %v148 = vstv %s147
    %v149 = vmul.f32 %v23, %v148
    %s150 = sld [smem:[#allocation2 + $0x17]]
    %v151 = vstv %s150
    %v152 = vmul.f32 %v25, %v151
    %v153 = vadd.f32 %v149, %v152
    %s154 = sld [smem:[#allocation2 + $0x23]]
    %v155 = vstv %s154
    %v156 = vadd.f32 %v153, %v155
    %v157 = vmax.f32 %v156, 0.0
    %s158 = sld [smem:[#allocation2 + $0x24]]
    %v159 = vstv %s158
    %v160 = vmul.f32 %v36, %v159
    %s161 = sld [smem:[#allocation2 + $0x25]]
    %v162 = vstv %s161
    %v163 = vmul.f32 %v47, %v162
    %v164 = vadd.f32 %v160, %v163
    %s165 = sld [smem:[#allocation2 + $0x26]]
    %v166 = vstv %s165
    %v167 = vmul.f32 %v58, %v166
    %v168 = vadd.f32 %v164, %v167
    %s169 = sld [smem:[#allocation2 + $0x27]]
    %v170 = vstv %s169
    %v171 = vmul.f32 %v69, %v170
    %v172 = vadd.f32 %v168, %v171
    %s173 = sld [smem:[#allocation2 + $0x28]]
    %v174 = vstv %s173
    %v175 = vmul.f32 %v80, %v174
    %v176 = vadd.f32 %v172, %v175
    %s177 = sld [smem:[#allocation2 + $0x29]]
    %v178 = vstv %s177
    %v179 = vmul.f32 %v91, %v178
    %v180 = vadd.f32 %v176, %v179
    %s181 = sld [smem:[#allocation2 + $0x2a]]
    %v182 = vstv %s181
    %v183 = vmul.f32 %v102, %v182
    %v184 = vadd.f32 %v180, %v183
    %s185 = sld [smem:[#allocation2 + $0x2b]]
    %v186 = vstv %s185
    %v187 = vmul.f32 %v113, %v186
    %v188 = vadd.f32 %v184, %v187
    %s189 = sld [smem:[#allocation2 + $0x2c]]
    %v190 = vstv %s189
    %v191 = vmul.f32 %v124, %v190
    %v192 = vadd.f32 %v188, %v191
    %s193 = sld [smem:[#allocation2 + $0x2d]]
    %v194 = vstv %s193
    %v195 = vmul.f32 %v135, %v194
    %v196 = vadd.f32 %v192, %v195
    %s197 = sld [smem:[#allocation2 + $0x2e]]
    %v198 = vstv %s197
    %v199 = vmul.f32 %v146, %v198
    %v200 = vadd.f32 %v196, %v199
    %s201 = sld [smem:[#allocation2 + $0x2f]]
    %v202 = vstv %s201
    %v203 = vmul.f32 %v157, %v202
    %v204 = vadd.f32 %v200, %v203
    %s205 = sld [smem:[#allocation2 + $0xb4]]
    %v206 = vstv %s205
    %v207 = vadd.f32 %v204, %v206
    %v208 = vmax.f32 %v207, 0.0
    %s209 = sld [smem:[#allocation2 + $0x30]]
    %v210 = vstv %s209
    %v211 = vmul.f32 %v36, %v210
    %s212 = sld [smem:[#allocation2 + $0x31]]
    %v213 = vstv %s212
    %v214 = vmul.f32 %v47, %v213
    %v215 = vadd.f32 %v211, %v214
    %s216 = sld [smem:[#allocation2 + $0x32]]
    %v217 = vstv %s216
    %v218 = vmul.f32 %v58, %v217
    %v219 = vadd.f32 %v215, %v218
    %s220 = sld [smem:[#allocation2 + $0x33]]
    %v221 = vstv %s220
    %v222 = vmul.f32 %v69, %v221
    %v223 = vadd.f32 %v219, %v222
    %s224 = sld [smem:[#allocation2 + $0x34]]
    %v225 = vstv %s224
    %v226 = vmul.f32 %v80, %v225
    %v227 = vadd.f32 %v223, %v226
    %s228 = sld [smem:[#allocation2 + $0x35]]
    %v229 = vstv %s228
    %v230 = vmul.f32 %v91, %v229
    %v231 = vadd.f32 %v227, %v230
    %s232 = sld [smem:[#allocation2 + $0x36]]
    %v233 = vstv %s232
    %v234 = vmul.f32 %v102, %v233
    %v235 = vadd.f32 %v231, %v234
    %s236 = sld [smem:[#allocation2 + $0x37]]
    %v237 = vstv %s236
    %v238 = vmul.f32 %v113, %v237
    %v239 = vadd.f32 %v235, %v238
    %s240 = sld [smem:[#allocation2 + $0x38]]
    %v241 = vstv %s240
    %v242 = vmul.f32 %v124, %v241
    %v243 = vadd.f32 %v239, %v242
    %s244 = sld [smem:[#allocation2 + $0x39]]
    %v245 = vstv %s244
    %v246 = vmul.f32 %v135, %v245
    %v247 = vadd.f32 %v243, %v246
    %s248 = sld [smem:[#allocation2 + $0x3a]]
    %v249 = vstv %s248
    %v250 = vmul.f32 %v146, %v249
    %v251 = vadd.f32 %v247, %v250
    %s252 = sld [smem:[#allocation2 + $0x3b]]
    %v253 = vstv %s252
    %v254 = vmul.f32 %v157, %v253
    %v255 = vadd.f32 %v251, %v254
    %s256 = sld [smem:[#allocation2 + $0xb5]]
    %v257 = vstv %s256
    %v258 = vadd.f32 %v255, %v257
    %v259 = vmax.f32 %v258, 0.0
    %s260 = sld [smem:[#allocation2 + $0x3c]]
    %v261 = vstv %s260
    %v262 = vmul.f32 %v36, %v261
    %s263 = sld [smem:[#allocation2 + $0x3d]]
    %v264 = vstv %s263
    %v265 = vmul.f32 %v47, %v264
    %v266 = vadd.f32 %v262, %v265
    %s267 = sld [smem:[#allocation2 + $0x3e]]
    %v268 = vstv %s267
    %v269 = vmul.f32 %v58, %v268
    %v270 = vadd.f32 %v266, %v269
    %s271 = sld [smem:[#allocation2 + $0x3f]]
    %v272 = vstv %s271
    %v273 = vmul.f32 %v69, %v272
    %v274 = vadd.f32 %v270, %v273
    %s275 = sld [smem:[#allocation2 + $0x40]]
    %v276 = vstv %s275
    %v277 = vmul.f32 %v80, %v276
    %v278 = vadd.f32 %v274, %v277
    %s279 = sld [smem:[#allocation2 + $0x41]]
    %v280 = vstv %s279
    %v281 = vmul.f32 %v91, %v280
    %v282 = vadd.f32 %v278, %v281
    %s283 = sld [smem:[#allocation2 + $0x42]]
    %v284 = vstv %s283
    %v285 = vmul.f32 %v102, %v284
    %v286 = vadd.f32 %v282, %v285
    %s287 = sld [smem:[#allocation2 + $0x43]]
    %v288 = vstv %s287
    %v289 = vmul.f32 %v113, %v288
    %v290 = vadd.f32 %v286, %v289
    %s291 = sld [smem:[#allocation2 + $0x44]]
    %v292 = vstv %s291
    %v293 = vmul.f32 %v124, %v292
    %v294 = vadd.f32 %v290, %v293
    %s295 = sld [smem:[#allocation2 + $0x45]]
    %v296 = vstv %s295
    %v297 = vmul.f32 %v135, %v296
    %v298 = vadd.f32 %v294, %v297
    %s299 = sld [smem:[#allocation2 + $0x46]]
    %v300 = vstv %s299
    %v301 = vmul.f32 %v146, %v300
    %v302 = vadd.f32 %v298, %v301
    %s303 = sld [smem:[#allocation2 + $0x47]]
    %v304 = vstv %s303
    %v305 = vmul.f32 %v157, %v304
    %v306 = vadd.f32 %v302, %v305
    %s307 = sld [smem:[#allocation2 + $0xb6]]
    %v308 = vstv %s307
    %v309 = vadd.f32 %v306, %v308
    %v310 = vmax.f32 %v309, 0.0
    %s311 = sld [smem:[#allocation2 + $0x48]]
    %v312 = vstv %s311
    %v313 = vmul.f32 %v36, %v312
    %s314 = sld [smem:[#allocation2 + $0x49]]
    %v315 = vstv %s314
    %v316 = vmul.f32 %v47, %v315
    %v317 = vadd.f32 %v313, %v316
    %s318 = sld [smem:[#allocation2 + $0x4a]]
    %v319 = vstv %s318
    %v320 = vmul.f32 %v58, %v319
    %v321 = vadd.f32 %v317, %v320
    %s322 = sld [smem:[#allocation2 + $0x4b]]
    %v323 = vstv %s322
    %v324 = vmul.f32 %v69, %v323
    %v325 = vadd.f32 %v321, %v324
    %s326 = sld [smem:[#allocation2 + $0x4c]]
    %v327 = vstv %s326
    %v328 = vmul.f32 %v80, %v327
    %v329 = vadd.f32 %v325, %v328
    %s330 = sld [smem:[#allocation2 + $0x4d]]
    %v331 = vstv %s330
    %v332 = vmul.f32 %v91, %v331
    %v333 = vadd.f32 %v329, %v332
    %s334 = sld [smem:[#allocation2 + $0x4e]]
    %v335 = vstv %s334
    %v336 = vmul.f32 %v102, %v335
    %v337 = vadd.f32 %v333, %v336
    %s338 = sld [smem:[#allocation2 + $0x4f]]
    %v339 = vstv %s338
    %v340 = vmul.f32 %v113, %v339
    %v341 = vadd.f32 %v337, %v340
    %s342 = sld [smem:[#allocation2 + $0x50]]
    %v343 = vstv %s342
    %v344 = vmul.f32 %v124, %v343
    %v345 = vadd.f32 %v341, %v344
    %s346 = sld [smem:[#allocation2 + $0x51]]
    %v347 = vstv %s346
    %v348 = vmul.f32 %v135, %v347
    %v349 = vadd.f32 %v345, %v348
    %s350 = sld [smem:[#allocation2 + $0x52]]
    %v351 = vstv %s350
    %v352 = vmul.f32 %v146, %v351
    %v353 = vadd.f32 %v349, %v352
    %s354 = sld [smem:[#allocation2 + $0x53]]
    %v355 = vstv %s354
    %v356 = vmul.f32 %v157, %v355
    %v357 = vadd.f32 %v353, %v356
    %s358 = sld [smem:[#allocation2 + $0xb7]]
    %v359 = vstv %s358
    %v360 = vadd.f32 %v357, %v359
    %v361 = vmax.f32 %v360, 0.0
    %s362 = sld [smem:[#allocation2 + $0x54]]
    %v363 = vstv %s362
    %v364 = vmul.f32 %v36, %v363
    %s365 = sld [smem:[#allocation2 + $0x55]]
    %v366 = vstv %s365
    %v367 = vmul.f32 %v47, %v366
    %v368 = vadd.f32 %v364, %v367
    %s369 = sld [smem:[#allocation2 + $0x56]]
    %v370 = vstv %s369
    %v371 = vmul.f32 %v58, %v370
    %v372 = vadd.f32 %v368, %v371
    %s373 = sld [smem:[#allocation2 + $0x57]]
    %v374 = vstv %s373
    %v375 = vmul.f32 %v69, %v374
    %v376 = vadd.f32 %v372, %v375
    %s377 = sld [smem:[#allocation2 + $0x58]]
    %v378 = vstv %s377
    %v379 = vmul.f32 %v80, %v378
    %v380 = vadd.f32 %v376, %v379
    %s381 = sld [smem:[#allocation2 + $0x59]]
    %v382 = vstv %s381
    %v383 = vmul.f32 %v91, %v382
    %v384 = vadd.f32 %v380, %v383
    %s385 = sld [smem:[#allocation2 + $0x5a]]
    %v386 = vstv %s385
    %v387 = vmul.f32 %v102, %v386
    %v388 = vadd.f32 %v384, %v387
    %s389 = sld [smem:[#allocation2 + $0x5b]]
    %v390 = vstv %s389
    %v391 = vmul.f32 %v113, %v390
    %v392 = vadd.f32 %v388, %v391
    %s393 = sld [smem:[#allocation2 + $0x5c]]
    %v394 = vstv %s393
    %v395 = vmul.f32 %v124, %v394
    %v396 = vadd.f32 %v392, %v395
    %s397 = sld [smem:[#allocation2 + $0x5d]]
    %v398 = vstv %s397
    %v399 = vmul.f32 %v135, %v398
    %v400 = vadd.f32 %v396, %v399
    %s401 = sld [smem:[#allocation2 + $0x5e]]
    %v402 = vstv %s401
    %v403 = vmul.f32 %v146, %v402
    %v404 = vadd.f32 %v400, %v403
    %s405 = sld [smem:[#allocation2 + $0x5f]]
    %v406 = vstv %s405
    %v407 = vmul.f32 %v157, %v406
    %v408 = vadd.f32 %v404, %v407
    %s409 = sld [smem:[#allocation2 + $0xb8]]
    %v410 = vstv %s409
    %v411 = vadd.f32 %v408, %v410
    %v412 = vmax.f32 %v411, 0.0
    %s413 = sld [smem:[#allocation2 + $0x60]]
    %v414 = vstv %s413
    %v415 = vmul.f32 %v36, %v414
    %s416 = sld [smem:[#allocation2 + $0x61]]
    %v417 = vstv %s416
    %v418 = vmul.f32 %v47, %v417
    %v419 = vadd.f32 %v415, %v418
    %s420 = sld [smem:[#allocation2 + $0x62]]
    %v421 = vstv %s420
    %v422 = vmul.f32 %v58, %v421
    %v423 = vadd.f32 %v419, %v422
    %s424 = sld [smem:[#allocation2 + $0x63]]
    %v425 = vstv %s424
    %v426 = vmul.f32 %v69, %v425
    %v427 = vadd.f32 %v423, %v426
    %s428 = sld [smem:[#allocation2 + $0x64]]
    %v429 = vstv %s428
    %v430 = vmul.f32 %v80, %v429
    %v431 = vadd.f32 %v427, %v430
    %s432 = sld [smem:[#allocation2 + $0x65]]
    %v433 = vstv %s432
    %v434 = vmul.f32 %v91, %v433
    %v435 = vadd.f32 %v431, %v434
    %s436 = sld [smem:[#allocation2 + $0x66]]
    %v437 = vstv %s436
    %v438 = vmul.f32 %v102, %v437
    %v439 = vadd.f32 %v435, %v438
    %s440 = sld [smem:[#allocation2 + $0x67]]
    %v441 = vstv %s440
    %v442 = vmul.f32 %v113, %v441
    %v443 = vadd.f32 %v439, %v442
    %s444 = sld [smem:[#allocation2 + $0x68]]
    %v445 = vstv %s444
    %v446 = vmul.f32 %v124, %v445
    %v447 = vadd.f32 %v443, %v446
    %s448 = sld [smem:[#allocation2 + $0x69]]
    %v449 = vstv %s448
    %v450 = vmul.f32 %v135, %v449
    %v451 = vadd.f32 %v447, %v450
    %s452 = sld [smem:[#allocation2 + $0x6a]]
    %v453 = vstv %s452
    %v454 = vmul.f32 %v146, %v453
    %v455 = vadd.f32 %v451, %v454
    %s456 = sld [smem:[#allocation2 + $0x6b]]
    %v457 = vstv %s456
    %v458 = vmul.f32 %v157, %v457
    %v459 = vadd.f32 %v455, %v458
    %s460 = sld [smem:[#allocation2 + $0xb9]]
    %v461 = vstv %s460
    %v462 = vadd.f32 %v459, %v461
    %v463 = vmax.f32 %v462, 0.0
    %s464 = sld [smem:[#allocation2 + $0x6c]]
    %v465 = vstv %s464
    %v466 = vmul.f32 %v36, %v465
    %s467 = sld [smem:[#allocation2 + $0x6d]]
    %v468 = vstv %s467
    %v469 = vmul.f32 %v47, %v468
    %v470 = vadd.f32 %v466, %v469
    %s471 = sld [smem:[#allocation2 + $0x6e]]
    %v472 = vstv %s471
    %v473 = vmul.f32 %v58, %v472
    %v474 = vadd.f32 %v470, %v473
    %s475 = sld [smem:[#allocation2 + $0x6f]]
    %v476 = vstv %s475
    %v477 = vmul.f32 %v69, %v476
    %v478 = vadd.f32 %v474, %v477
    %s479 = sld [smem:[#allocation2 + $0x70]]
    %v480 = vstv %s479
    %v481 = vmul.f32 %v80, %v480
    %v482 = vadd.f32 %v478, %v481
    %s483 = sld [smem:[#allocation2 + $0x71]]
    %v484 = vstv %s483
    %v485 = vmul.f32 %v91, %v484
    %v486 = vadd.f32 %v482, %v485
    %s487 = sld [smem:[#allocation2 + $0x72]]
    %v488 = vstv %s487
    %v489 = vmul.f32 %v102, %v488
    %v490 = vadd.f32 %v486, %v489
    %s491 = sld [smem:[#allocation2 + $0x73]]
    %v492 = vstv %s491
    %v493 = vmul.f32 %v113, %v492
    %v494 = vadd.f32 %v490, %v493
    %s495 = sld [smem:[#allocation2 + $0x74]]
    %v496 = vstv %s495
    %v497 = vmul.f32 %v124, %v496
    %v498 = vadd.f32 %v494, %v497
    %s499 = sld [smem:[#allocation2 + $0x75]]
    %v500 = vstv %s499
    %v501 = vmul.f32 %v135, %v500
    %v502 = vadd.f32 %v498, %v501
    %s503 = sld [smem:[#allocation2 + $0x76]]
    %v504 = vstv %s503
    %v505 = vmul.f32 %v146, %v504
    %v506 = vadd.f32 %v502, %v505
    %s507 = sld [smem:[#allocation2 + $0x77]]
    %v508 = vstv %s507
    %v509 = vmul.f32 %v157, %v508
    %v510 = vadd.f32 %v506, %v509
    %s511 = sld [smem:[#allocation2 + $0xba]]
    %v512 = vstv %s511
    %v513 = vadd.f32 %v510, %v512
    %v514 = vmax.f32 %v513, 0.0
    %s515 = sld [smem:[#allocation2 + $0x78]]
    %v516 = vstv %s515
    %v517 = vmul.f32 %v36, %v516
    %s518 = sld [smem:[#allocation2 + $0x79]]
    %v519 = vstv %s518
    %v520 = vmul.f32 %v47, %v519
    %v521 = vadd.f32 %v517, %v520
    %s522 = sld [smem:[#allocation2 + $0x7a]]
    %v523 = vstv %s522
    %v524 = vmul.f32 %v58, %v523
    %v525 = vadd.f32 %v521, %v524
    %s526 = sld [smem:[#allocation2 + $0x7b]]
    %v527 = vstv %s526
    %v528 = vmul.f32 %v69, %v527
    %v529 = vadd.f32 %v525, %v528
    %s530 = sld [smem:[#allocation2 + $0x7c]]
    %v531 = vstv %s530
    %v532 = vmul.f32 %v80, %v531
    %v533 = vadd.f32 %v529, %v532
    %s534 = sld [smem:[#allocation2 + $0x7d]]
    %v535 = vstv %s534
    %v536 = vmul.f32 %v91, %v535
    %v537 = vadd.f32 %v533, %v536
    %s538 = sld [smem:[#allocation2 + $0x7e]]
    %v539 = vstv %s538
    %v540 = vmul.f32 %v102, %v539
    %v541 = vadd.f32 %v537, %v540
    %s542 = sld [smem:[#allocation2 + $0x7f]]
    %v543 = vstv %s542
    %v544 = vmul.f32 %v113, %v543
    %v545 = vadd.f32 %v541, %v544
    %s546 = sld [smem:[#allocation2 + $0x80]]
    %v547 = vstv %s546
    %v548 = vmul.f32 %v124, %v547
    %v549 = vadd.f32 %v545, %v548
    %s550 = sld [smem:[#allocation2 + $0x81]]
    %v551 = vstv %s550
    %v552 = vmul.f32 %v135, %v551
    %v553 = vadd.f32 %v549, %v552
    %s554 = sld [smem:[#allocation2 + $0x82]]
    %v555 = vstv %s554
    %v556 = vmul.f32 %v146, %v555
    %v557 = vadd.f32 %v553, %v556
    %s558 = sld [smem:[#allocation2 + $0x83]]
    %v559 = vstv %s558
    %v560 = vmul.f32 %v157, %v559
    %v561 = vadd.f32 %v557, %v560
    %s562 = sld [smem:[#allocation2 + $0xbb]]
    %v563 = vstv %s562
    %v564 = vadd.f32 %v561, %v563
    %v565 = vmax.f32 %v564, 0.0
    %s566 = sld [smem:[#allocation2 + $0x84]]
    %v567 = vstv %s566
    %v568 = vmul.f32 %v36, %v567
    %s569 = sld [smem:[#allocation2 + $0x85]]
    %v570 = vstv %s569
    %v571 = vmul.f32 %v47, %v570
    %v572 = vadd.f32 %v568, %v571
    %s573 = sld [smem:[#allocation2 + $0x86]]
    %v574 = vstv %s573
    %v575 = vmul.f32 %v58, %v574
    %v576 = vadd.f32 %v572, %v575
    %s577 = sld [smem:[#allocation2 + $0x87]]
    %v578 = vstv %s577
    %v579 = vmul.f32 %v69, %v578
    %v580 = vadd.f32 %v576, %v579
    %s581 = sld [smem:[#allocation2 + $0x88]]
    %v582 = vstv %s581
    %v583 = vmul.f32 %v80, %v582
    %v584 = vadd.f32 %v580, %v583
    %s585 = sld [smem:[#allocation2 + $0x89]]
    %v586 = vstv %s585
    %v587 = vmul.f32 %v91, %v586
    %v588 = vadd.f32 %v584, %v587
    %s589 = sld [smem:[#allocation2 + $0x8a]]
    %v590 = vstv %s589
    %v591 = vmul.f32 %v102, %v590
    %v592 = vadd.f32 %v588, %v591
    %s593 = sld [smem:[#allocation2 + $0x8b]]
    %v594 = vstv %s593
    %v595 = vmul.f32 %v113, %v594
    %v596 = vadd.f32 %v592, %v595
    %s597 = sld [smem:[#allocation2 + $0x8c]]
    %v598 = vstv %s597
    %v599 = vmul.f32 %v124, %v598
    %v600 = vadd.f32 %v596, %v599
    %s601 = sld [smem:[#allocation2 + $0x8d]]
    %v602 = vstv %s601
    %v603 = vmul.f32 %v135, %v602
    %v604 = vadd.f32 %v600, %v603
    %s605 = sld [smem:[#allocation2 + $0x8e]]
    %v606 = vstv %s605
    %v607 = vmul.f32 %v146, %v606
    %v608 = vadd.f32 %v604, %v607
    %s609 = sld [smem:[#allocation2 + $0x8f]]
    %v610 = vstv %s609
    %v611 = vmul.f32 %v157, %v610
    %v612 = vadd.f32 %v608, %v611
    %s613 = sld [smem:[#allocation2 + $0xbc]]
    %v614 = vstv %s613
    %v615 = vadd.f32 %v612, %v614
    %v616 = vmax.f32 %v615, 0.0
    %s617 = sld [smem:[#allocation2 + $0x90]]
    %v618 = vstv %s617
    %v619 = vmul.f32 %v36, %v618
    %s620 = sld [smem:[#allocation2 + $0x91]]
    %v621 = vstv %s620
    %v622 = vmul.f32 %v47, %v621
    %v623 = vadd.f32 %v619, %v622
    %s624 = sld [smem:[#allocation2 + $0x92]]
    %v625 = vstv %s624
    %v626 = vmul.f32 %v58, %v625
    %v627 = vadd.f32 %v623, %v626
    %s628 = sld [smem:[#allocation2 + $0x93]]
    %v629 = vstv %s628
    %v630 = vmul.f32 %v69, %v629
    %v631 = vadd.f32 %v627, %v630
    %s632 = sld [smem:[#allocation2 + $0x94]]
    %v633 = vstv %s632
    %v634 = vmul.f32 %v80, %v633
    %v635 = vadd.f32 %v631, %v634
    %s636 = sld [smem:[#allocation2 + $0x95]]
    %v637 = vstv %s636
    %v638 = vmul.f32 %v91, %v637
    %v639 = vadd.f32 %v635, %v638
    %s640 = sld [smem:[#allocation2 + $0x96]]
    %v641 = vstv %s640
    %v642 = vmul.f32 %v102, %v641
    %v643 = vadd.f32 %v639, %v642
    %s644 = sld [smem:[#allocation2 + $0x97]]
    %v645 = vstv %s644
    %v646 = vmul.f32 %v113, %v645
    %v647 = vadd.f32 %v643, %v646
    %s648 = sld [smem:[#allocation2 + $0x98]]
    %v649 = vstv %s648
    %v650 = vmul.f32 %v124, %v649
    %v651 = vadd.f32 %v647, %v650
    %s652 = sld [smem:[#allocation2 + $0x99]]
    %v653 = vstv %s652
    %v654 = vmul.f32 %v135, %v653
    %v655 = vadd.f32 %v651, %v654
    %s656 = sld [smem:[#allocation2 + $0x9a]]
    %v657 = vstv %s656
    %v658 = vmul.f32 %v146, %v657
    %v659 = vadd.f32 %v655, %v658
    %s660 = sld [smem:[#allocation2 + $0x9b]]
    %v661 = vstv %s660
    %v662 = vmul.f32 %v157, %v661
    %v663 = vadd.f32 %v659, %v662
    %s664 = sld [smem:[#allocation2 + $0xbd]]
    %v665 = vstv %s664
    %v666 = vadd.f32 %v663, %v665
    %v667 = vmax.f32 %v666, 0.0
    %s668 = sld [smem:[#allocation2 + $0x9c]]
    %v669 = vstv %s668
    %v670 = vmul.f32 %v36, %v669
    %s671 = sld [smem:[#allocation2 + $0x9d]]
    %v672 = vstv %s671
    %v673 = vmul.f32 %v47, %v672
    %v674 = vadd.f32 %v670, %v673
    %s675 = sld [smem:[#allocation2 + $0x9e]]
    %v676 = vstv %s675
    %v677 = vmul.f32 %v58, %v676
    %v678 = vadd.f32 %v674, %v677
    %s679 = sld [smem:[#allocation2 + $0x9f]]
    %v680 = vstv %s679
    %v681 = vmul.f32 %v69, %v680
    %v682 = vadd.f32 %v678, %v681
    %s683 = sld [smem:[#allocation2 + $0xa0]]
    %v684 = vstv %s683
    %v685 = vmul.f32 %v80, %v684
    %v686 = vadd.f32 %v682, %v685
    %s687 = sld [smem:[#allocation2 + $0xa1]]
    %v688 = vstv %s687
    %v689 = vmul.f32 %v91, %v688
    %v690 = vadd.f32 %v686, %v689
    %s691 = sld [smem:[#allocation2 + $0xa2]]
    %v692 = vstv %s691
    %v693 = vmul.f32 %v102, %v692
    %v694 = vadd.f32 %v690, %v693
    %s695 = sld [smem:[#allocation2 + $0xa3]]
    %v696 = vstv %s695
    %v697 = vmul.f32 %v113, %v696
    %v698 = vadd.f32 %v694, %v697
    %s699 = sld [smem:[#allocation2 + $0xa4]]
    %v700 = vstv %s699
    %v701 = vmul.f32 %v124, %v700
    %v702 = vadd.f32 %v698, %v701
    %s703 = sld [smem:[#allocation2 + $0xa5]]
    %v704 = vstv %s703
    %v705 = vmul.f32 %v135, %v704
    %v706 = vadd.f32 %v702, %v705
    %s707 = sld [smem:[#allocation2 + $0xa6]]
    %v708 = vstv %s707
    %v709 = vmul.f32 %v146, %v708
    %v710 = vadd.f32 %v706, %v709
    %s711 = sld [smem:[#allocation2 + $0xa7]]
    %v712 = vstv %s711
    %v713 = vmul.f32 %v157, %v712
    %v714 = vadd.f32 %v710, %v713
    %s715 = sld [smem:[#allocation2 + $0xbe]]
    %v716 = vstv %s715
    %v717 = vadd.f32 %v714, %v716
    %v718 = vmax.f32 %v717, 0.0
    %s719 = sld [smem:[#allocation2 + $0xa8]]
    %v720 = vstv %s719
    %v721 = vmul.f32 %v36, %v720
    %s722 = sld [smem:[#allocation2 + $0xa9]]
    %v723 = vstv %s722
    %v724 = vmul.f32 %v47, %v723
    %v725 = vadd.f32 %v721, %v724
    %s726 = sld [smem:[#allocation2 + $0xaa]]
    %v727 = vstv %s726
    %v728 = vmul.f32 %v58, %v727
    %v729 = vadd.f32 %v725, %v728
    %s730 = sld [smem:[#allocation2 + $0xab]]
    %v731 = vstv %s730
    %v732 = vmul.f32 %v69, %v731
    %v733 = vadd.f32 %v729, %v732
    %s734 = sld [smem:[#allocation2 + $0xac]]
    %v735 = vstv %s734
    %v736 = vmul.f32 %v80, %v735
    %v737 = vadd.f32 %v733, %v736
    %s738 = sld [smem:[#allocation2 + $0xad]]
    %v739 = vstv %s738
    %v740 = vmul.f32 %v91, %v739
    %v741 = vadd.f32 %v737, %v740
    %s742 = sld [smem:[#allocation2 + $0xae]]
    %v743 = vstv %s742
    %v744 = vmul.f32 %v102, %v743
    %v745 = vadd.f32 %v741, %v744
    %s746 = sld [smem:[#allocation2 + $0xaf]]
    %v747 = vstv %s746
    %v748 = vmul.f32 %v113, %v747
    %v749 = vadd.f32 %v745, %v748
    %s750 = sld [smem:[#allocation2 + $0xb0]]
    %v751 = vstv %s750
    %v752 = vmul.f32 %v124, %v751
    %v753 = vadd.f32 %v749, %v752
    %s754 = sld [smem:[#allocation2 + $0xb1]]
    %v755 = vstv %s754
    %v756 = vmul.f32 %v135, %v755
    %v757 = vadd.f32 %v753, %v756
    %s758 = sld [smem:[#allocation2 + $0xb2]]
    %v759 = vstv %s758
    %v760 = vmul.f32 %v146, %v759
    %v761 = vadd.f32 %v757, %v760
    %s762 = sld [smem:[#allocation2 + $0xb3]]
    %v763 = vstv %s762
    %v764 = vmul.f32 %v157, %v763
    %v765 = vadd.f32 %v761, %v764
    %s766 = sld [smem:[#allocation2 + $0xbf]]
    %v767 = vstv %s766
    %v768 = vadd.f32 %v765, %v767
    %v769 = vmax.f32 %v768, 0.0
    %s770 = sld [smem:[#allocation2 + $0xc0]]
    %v771 = vstv %s770
    %v772 = vmul.f32 %v208, %v771
    %s773 = sld [smem:[#allocation2 + $0xc1]]
    %v774 = vstv %s773
    %v775 = vmul.f32 %v259, %v774
    %v776 = vadd.f32 %v772, %v775
    %s777 = sld [smem:[#allocation2 + $0xc2]]
    %v778 = vstv %s777
    %v779 = vmul.f32 %v310, %v778
    %v780 = vadd.f32 %v776, %v779
    %s781 = sld [smem:[#allocation2 + $0xc3]]
    %v782 = vstv %s781
    %v783 = vmul.f32 %v361, %v782
    %v784 = vadd.f32 %v780, %v783
    %s785 = sld [smem:[#allocation2 + $0xc4]]
    %v786 = vstv %s785
    %v787 = vmul.f32 %v412, %v786
    %v788 = vadd.f32 %v784, %v787
    %s789 = sld [smem:[#allocation2 + $0xc5]]
    %v790 = vstv %s789
    %v791 = vmul.f32 %v463, %v790
    %v792 = vadd.f32 %v788, %v791
    %s793 = sld [smem:[#allocation2 + $0xc6]]
    %v794 = vstv %s793
    %v795 = vmul.f32 %v514, %v794
    %v796 = vadd.f32 %v792, %v795
    %s797 = sld [smem:[#allocation2 + $0xc7]]
    %v798 = vstv %s797
    %v799 = vmul.f32 %v565, %v798
    %v800 = vadd.f32 %v796, %v799
    %s801 = sld [smem:[#allocation2 + $0xc8]]
    %v802 = vstv %s801
    %v803 = vmul.f32 %v616, %v802
    %v804 = vadd.f32 %v800, %v803
    %s805 = sld [smem:[#allocation2 + $0xc9]]
    %v806 = vstv %s805
    %v807 = vmul.f32 %v667, %v806
    %v808 = vadd.f32 %v804, %v807
    %s809 = sld [smem:[#allocation2 + $0xca]]
    %v810 = vstv %s809
    %v811 = vmul.f32 %v718, %v810
    %v812 = vadd.f32 %v808, %v811
    %s813 = sld [smem:[#allocation2 + $0xcb]]
    %v814 = vstv %s813
    %v815 = vmul.f32 %v769, %v814
    %v816 = vadd.f32 %v812, %v815
    %s817 = sld [smem:[#allocation2 + $0xcc]]
    %v818 = vstv %s817
    %v819 = vadd.f32 %v816, %v818
    %820 = vst [vmem:[#allocation5] sm:$0x1] %v819
    // Predicated region
    $region14: #{tpu_custom_call.1} parent=1 // pred_check
      _
    $region15: #{tpu_custom_call.1} parent=1 // pred_check_branch
      %822 = sbr.rel (0) target = $region17
    $region16: #{tpu_custom_call.1} parent=1 // pred_region
      %s824 = ssub.s32 16, 16
      %825 = vsyncadd [#allocation3], %s824
      %s827 = sshll.u32 [#allocation5], 4
      %s828 = int_to_ptr.vmem [resolvable:$true] %s827
      %830 = dma.vmem_to_hbm [thread:$0]  %s828, 16, %s2, [#allocation3]
    $region17: #{tpu_custom_call.1} parent=1 // pred_fallthru
      _
    // Predicated region
    $region18: #{tpu_custom_call.1} parent=1 // pred_check
      _
    $region19: #{tpu_custom_call.1} parent=1 // pred_check_branch
      %832 = sbr.rel (0) target = $region21
    $region20: #{tpu_custom_call.1} parent=1 // pred_region
      %833 = dma.done [#allocation3], 16
    $region21: #{tpu_custom_call.1} parent=1 // pred_fallthru
      _
    %834 = vsyncpa [#allocation3], 1
    %835 = vsyncpa [#allocation4], 1

</llo_original>
